<compile_context>
chip_gen: v7x
topology: tpu7x:2x2x1
jax: 0.10.0
libtpu: 0.0.40
codegen_flags: <defaults>
</compile_context>

<pallas_src>
import functools

import jax
import jax.numpy as jnp
from jax.experimental import pallas as pl
from jax.experimental.pallas import tpu as pltpu


FC1_OUT = 512  # per-branch hidden width (fixed by the module)


def _padded_out_width(action_space):
    # lane-dense output width (multiple of 128, at least one full vreg lane row)
    return max(128, ((action_space + 127) // 128) * 128)


def _detect_bf16_epilogue():
    # v6e / v7x have a bf16 VPU path; v5e and older do not.
    try:
        kind = jax.devices()[0].device_kind.lower()
    except Exception:
        return False
    return not any(tag in kind for tag in ("v2", "v3", "v4", "v5"))


_BF16_EPILOGUE = _detect_bf16_epilogue()


# ----------------------------- Pallas kernel --------------------------------

def _fused_dqn_kernel(x_ref, wc_ref, bc_ref, w1_ref, b1_ref, w2_ref, b2_ref,
                      o_ref, *, bf16_epilogue):
    # x_ref : (bm, H*W)      bf16
    # wc_ref: (H*W, 64*H)    bf16   block-diagonal conv weight
    # bc_ref: (1, 64*H)      f32    conv bias tiled per h
    # w1_ref: (64*H, 1024)   bf16   [fc1_advance | fc1_value] (columns permuted)
    # b1_ref: (1, 1024)      f32
    # w2_ref: (1024, N_pad)  bf16   dueling-combine-folded fc2, zero-padded
    # b2_ref: (1, N_pad)     f32
    # o_ref : (bm, N_pad)    f32    lane-dense output (cols >= A are exactly 0)

    # conv(1xW) + bias + ReLU, already in flattened (h*64 + oc) feature order.
    feat = jnp.dot(x_ref[...], wc_ref[...], preferred_element_type=jnp.float32)
    if bf16_epilogue:
        feat = jnp.maximum(feat.astype(jnp.bfloat16)
                           + bc_ref[...].astype(jnp.bfloat16), 0.0)
    else:
        feat = jnp.maximum(feat + bc_ref[...], 0.0).astype(jnp.bfloat16)

    # merged fc1 (advantage | value) + bias + ReLU.
    hid = jnp.dot(feat, w1_ref[...], preferred_element_type=jnp.float32)
    if bf16_epilogue:
        hid = jnp.maximum(hid.astype(jnp.bfloat16)
                          + b1_ref[...].astype(jnp.bfloat16), 0.0)
    else:
        hid = jnp.maximum(hid + b1_ref[...], 0.0).astype(jnp.bfloat16)

    # fc2 with the dueling combine (val + adv - mean(adv)) folded into the
    # padded weights/bias: single matmul + bias + full-width store.
    o_ref[...] = (jnp.dot(hid, w2_ref[...], preferred_element_type=jnp.float32)
                  + b2_ref[...])


# ------------------------ one-time parameter prep ----------------------------

def prepare_params(params, *, height, width, action_space):
    """Fold the PyTorch parameters into fused, MXU-friendly operands (run once)."""
    wc, bc, w1a, b1a, w1v, b1v, w2a, b2a, w2v, b2v = params
    H, W, A = height, width, action_space
    F = 64 * H
    HID = 2 * FC1_OUT
    N_pad = _padded_out_width(A)

    # conv as block-diagonal matmul weight: row h*W+w, col h*64+oc -> wc[oc, w].
    wc2 = wc.reshape(64, W).T.astype(jnp.float32)                  # (W, 64)
    wconv_bd = jnp.einsum("hk,wo->hwko", jnp.eye(H, dtype=jnp.float32),
                          wc2).reshape(H * W, F)                   # (H*W, 64H)
    bconv = jnp.tile(bc.astype(jnp.float32), H).reshape(1, F)      # bc[oc] at h*64+oc

    # permute fc1 columns: our feature col (h*64+oc) <- torch flatten col (oc*H+h).
    perm = (jnp.arange(64)[None, :] * H + jnp.arange(H)[:, None]).reshape(-1)
    w1_merged = jnp.concatenate([w1a[:, perm], w1v[:, perm]], axis=0).T  # (F, 1024)
    b1_merged = jnp.concatenate([b1a, b1v]).reshape(1, HID).astype(jnp.float32)

    # fc2 with the dueling combine folded in:
    #   out = (hid_adv @ w2a.T + b2a) @ M + (hid_val @ w2v.T + b2v) * 1_A
    #   with M = I_A - (1/A) * ones(A, A)
    M = jnp.eye(A, dtype=jnp.float32) - jnp.full((A, A), 1.0 / A, jnp.float32)
    w2_adv = w2a.T.astype(jnp.float32) @ M                         # (512, A)
    w2_val = jnp.tile(w2v.T.astype(jnp.float32), (1, A))           # (512, A)
    b2_comb = b2a.astype(jnp.float32) @ M + b2v.astype(jnp.float32)  # (A,)

    w2_merged = jnp.zeros((HID, N_pad), jnp.float32)
    w2_merged = w2_merged.at[:FC1_OUT, :A].set(w2_adv)
    w2_merged = w2_merged.at[FC1_OUT:, :A].set(w2_val)
    b2_merged = jnp.zeros((1, N_pad), jnp.float32).at[0, :A].set(b2_comb)

    return (wconv_bd.astype(jnp.bfloat16), bconv,
            w1_merged.astype(jnp.bfloat16), b1_merged,
            w2_merged.astype(jnp.bfloat16), b2_merged)


# ------------------------------- forward -------------------------------------

@functools.partial(jax.jit, static_argnames=("height", "width", "action_space"))
def dueling_dqn_forward(x, prepped, *, height, width, action_space):
    wconv, bconv, w1, b1, w2, b2 = prepped
    B = x.shape[0]
    H, W, A = height, width, action_space
    HW, F, HID = H * W, 64 * H, 2 * FC1_OUT
    N_pad = w2.shape[1]

    x_flat = x.reshape(B, HW).astype(jnp.bfloat16)

    # batch tiling: one block for small B; larger B uses 256/512-row tiles so
    # the grid has >=2 "parallel" steps (v7x dual-TC sharding) while keeping the
    # MXU M-dimension >= 256. Weights stay VMEM-resident (constant index_maps).
    if B <= 256:
        bm = B
    elif B <= 512:
        bm = 256
    else:
        bm = 512
    grid = (pl.cdiv(B, bm),)

    flops = 2 * B * (HW * F + F * HID + HID * N_pad)
    bytes_accessed = (B * HW * 2 + HW * F * 2 + F * 4 + F * HID * 2 + HID * 4
                      + HID * N_pad * 2 + N_pad * 4 + B * N_pad * 4)

    out_pad = pl.pallas_call(
        functools.partial(_fused_dqn_kernel, bf16_epilogue=_BF16_EPILOGUE),
        out_shape=jax.ShapeDtypeStruct((B, N_pad), jnp.float32),
        grid_spec=pltpu.PrefetchScalarGridSpec(
            num_scalar_prefetch=0,
            grid=grid,
            in_specs=[
                pl.BlockSpec((bm, HW), lambda i: (i, 0)),
                pl.BlockSpec((HW, F), lambda i: (0, 0)),
                pl.BlockSpec((1, F), lambda i: (0, 0)),
                pl.BlockSpec((F, HID), lambda i: (0, 0)),
                pl.BlockSpec((1, HID), lambda i: (0, 0)),
                pl.BlockSpec((HID, N_pad), lambda i: (0, 0)),
                pl.BlockSpec((1, N_pad), lambda i: (0, 0)),
            ],
            out_specs=pl.BlockSpec((bm, N_pad), lambda i: (i, 0)),
        ),
        compiler_params=pltpu.CompilerParams(
            dimension_semantics=("parallel",)),
        cost_estimate=pl.CostEstimate(
            flops=flops, transcendentals=0, bytes_accessed=bytes_accessed),
    )(x_flat, wconv, bconv, w1, b1, w2, b2)

    # drop the zero padding columns (lane-dense store happens inside the kernel)
    return out_pad[:, :A]


# ------------------------- pure-JAX reference (check) ------------------------

def dueling_dqn_reference(x, params, *, height, width, action_space):
    wc, bc, w1a, b1a, w1v, b1v, w2a, b2a, w2v, b2v = params
    B = x.shape[0]
    conv = jnp.einsum("bhw,ow->boh", x[:, 0], wc.reshape(64, width)) \
        + bc[None, :, None]
    conv = jnp.maximum(conv, 0.0)                      # (B, 64, H)
    flat = conv.reshape(B, -1)                         # torch flatten: oc*H + h
    adv = jnp.maximum(flat @ w1a.T + b1a, 0.0)
    val = jnp.maximum(flat @ w1v.T + b1v, 0.0)
    adv2 = adv @ w2a.T + b2a
    val2 = val @ w2v.T + b2v                           # (B, 1) -> broadcast
    return val2 + adv2 - adv2.mean(axis=1, keepdims=True)


# ----------------------------- param init ------------------------------------

def init_params(key, *, height, width, action_space):
    def uniform(k, shape, fan_in):
        bound = 1.0 / jnp.sqrt(jnp.float32(fan_in))
        return jax.random.uniform(k, shape, jnp.float32, -bound, bound)

    ks = jax.random.split(key, 10)
    F = 64 * height
    wc = uniform(ks[0], (64, 1, 1, width), width)      # conv1 weight
    bc = uniform(ks[1], (64,), width)
    w1a = uniform(ks[2], (512, F), F)                  # fc1_advance
    b1a = uniform(ks[3], (512,), F)
    w1v = uniform(ks[4], (512, F), F)                  # fc1_value
    b1v = uniform(ks[5], (512,), F)
    w2a = uniform(ks[6], (action_space, 512), 512)     # fc2_advance
    b2a = uniform(ks[7], (action_space,), 512)
    w2v = uniform(ks[8], (1, 512), 512)                # fc2_value
    b2v = uniform(ks[9], (1,), 512)
    return (wc, bc, w1a, b1a, w1v, b1v, w2a, b2a, w2v, b2v)


# --------------------------------- main ---------------------------------------

if __name__ == "__main__":
    B, height, width, action_space = 2, 8, 16, 5

    key = jax.random.PRNGKey(0)
    k_x, k_p = jax.random.split(key)
    x = jax.random.normal(k_x, (B, 1, height, width), jnp.float32)
    params = init_params(k_p, height=height, width=width,
                         action_space=action_space)

    # one-time weight prep (fused / merged / dueling-folded / padded operands)
    prepped = jax.block_until_ready(
        prepare_params(params, height=height, width=width,
                       action_space=action_space))

    out = dueling_dqn_forward(x, prepped, height=height, width=width,
                              action_space=action_space)
    out = jax.block_until_ready(out)

    ref = dueling_dqn_reference(x, params, height=height, width=width,
                                action_space=action_space)
    ref = jax.block_until_ready(ref)

    assert out.shape == (B, action_space)
    # tolerance accounts for bf16 MXU inputs / bf16 epilogue (f32 accumulation)
    assert jnp.allclose(out, ref, atol=3e-2, rtol=3e-2), \
        float(jnp.max(jnp.abs(out - ref)))

    print("KERNEL_OK")
</pallas_src>

<mosaic_0001>
module attributes {stable_mosaic.version = 11 : i64} {
  func.func @_fused_dqn_kernel(%arg0: i32, %arg1: memref<2x128xbf16, #tpu.memory_space<vmem>>, %arg2: memref<128x512xbf16, #tpu.memory_space<vmem>>, %arg3: memref<1x512xf32, #tpu.memory_space<vmem>>, %arg4: memref<512x1024xbf16, #tpu.memory_space<vmem>>, %arg5: memref<1x1024xf32, #tpu.memory_space<vmem>>, %arg6: memref<1024x128xbf16, #tpu.memory_space<vmem>>, %arg7: memref<1x128xf32, #tpu.memory_space<vmem>>, %arg8: memref<2x128xf32, #tpu.memory_space<vmem>>) attributes {dimension_semantics = [#tpu.dimension_semantics<parallel>], iteration_bounds = array<i64: 1>, scalar_prefetch = 0 : i64, scratch_operands = 0 : i64, tpu.core_type = #tpu.core_type<tc>, window_params = [{transform_indices = @transform_0, window_bounds = array<i64: 2, 128>}, {pipeline_mode = #tpu.pipeline_mode<synchronous>, transform_indices = @transform_1, window_bounds = array<i64: 128, 512>}, {pipeline_mode = #tpu.pipeline_mode<synchronous>, transform_indices = @transform_2, window_bounds = array<i64: 1, 512>}, {pipeline_mode = #tpu.pipeline_mode<synchronous>, transform_indices = @transform_3, window_bounds = array<i64: 512, 1024>}, {pipeline_mode = #tpu.pipeline_mode<synchronous>, transform_indices = @transform_4, window_bounds = array<i64: 1, 1024>}, {pipeline_mode = #tpu.pipeline_mode<synchronous>, transform_indices = @transform_5, window_bounds = array<i64: 1024, 128>}, {pipeline_mode = #tpu.pipeline_mode<synchronous>, transform_indices = @transform_6, window_bounds = array<i64: 1, 128>}, {transform_indices = @transform_7, window_bounds = array<i64: 2, 128>}]} {
    %c0 = arith.constant 0 : index
    %c0_0 = arith.constant 0 : index
    %0 = vector.load %arg1[%c0, %c0_0] : memref<2x128xbf16, #tpu.memory_space<vmem>>, vector<2x128xbf16>
    %c0_1 = arith.constant 0 : index
    %c0_2 = arith.constant 0 : index
    %1 = vector.load %arg2[%c0_1, %c0_2] : memref<128x512xbf16, #tpu.memory_space<vmem>>, vector<128x512xbf16>
    %cst = arith.constant dense<0.000000e+00> : vector<2x512xf32>
    %2 = tpu.matmul %0, %1, %cst {dimension_numbers = #tpu.dot_dimension_numbers<[1], [0], [0], [1], [0, 0, 1, 1], [], []>} : vector<2x128xbf16>, vector<128x512xbf16>, vector<2x512xf32> -> vector<2x512xf32>
    %3 = arith.truncf %2 : vector<2x512xf32> to vector<2x512xbf16>
    %c0_3 = arith.constant 0 : index
    %c0_4 = arith.constant 0 : index
    %4 = vector.load %arg3[%c0_3, %c0_4] : memref<1x512xf32, #tpu.memory_space<vmem>>, vector<1x512xf32>
    %5 = arith.truncf %4 : vector<1x512xf32> to vector<1x512xbf16>
    %6 = vector.broadcast %5 : vector<1x512xbf16> to vector<2x512xbf16>
    %7 = arith.addf %3, %6 : vector<2x512xbf16>
    %cst_5 = arith.constant 0.000000e+00 : bf16
    %8 = vector.broadcast %cst_5 : bf16 to vector<2x512xbf16>
    %9 = arith.maximumf %7, %8 : vector<2x512xbf16>
    %c0_6 = arith.constant 0 : index
    %c0_7 = arith.constant 0 : index
    %10 = vector.load %arg4[%c0_6, %c0_7] : memref<512x1024xbf16, #tpu.memory_space<vmem>>, vector<512x1024xbf16>
    %cst_8 = arith.constant dense<0.000000e+00> : vector<2x1024xf32>
    %11 = tpu.matmul %9, %10, %cst_8 {dimension_numbers = #tpu.dot_dimension_numbers<[1], [0], [0], [1], [0, 0, 1, 1], [], []>} : vector<2x512xbf16>, vector<512x1024xbf16>, vector<2x1024xf32> -> vector<2x1024xf32>
    %12 = arith.truncf %11 : vector<2x1024xf32> to vector<2x1024xbf16>
    %c0_9 = arith.constant 0 : index
    %c0_10 = arith.constant 0 : index
    %13 = vector.load %arg5[%c0_9, %c0_10] : memref<1x1024xf32, #tpu.memory_space<vmem>>, vector<1x1024xf32>
    %14 = arith.truncf %13 : vector<1x1024xf32> to vector<1x1024xbf16>
    %15 = vector.broadcast %14 : vector<1x1024xbf16> to vector<2x1024xbf16>
    %16 = arith.addf %12, %15 : vector<2x1024xbf16>
    %cst_11 = arith.constant 0.000000e+00 : bf16
    %17 = vector.broadcast %cst_11 : bf16 to vector<2x1024xbf16>
    %18 = arith.maximumf %16, %17 : vector<2x1024xbf16>
    %c0_12 = arith.constant 0 : index
    %c0_13 = arith.constant 0 : index
    %19 = vector.load %arg6[%c0_12, %c0_13] : memref<1024x128xbf16, #tpu.memory_space<vmem>>, vector<1024x128xbf16>
    %cst_14 = arith.constant dense<0.000000e+00> : vector<2x128xf32>
    %20 = tpu.matmul %18, %19, %cst_14 {dimension_numbers = #tpu.dot_dimension_numbers<[1], [0], [0], [1], [0, 0, 1, 1], [], []>} : vector<2x1024xbf16>, vector<1024x128xbf16>, vector<2x128xf32> -> vector<2x128xf32>
    %c0_15 = arith.constant 0 : index
    %c0_16 = arith.constant 0 : index
    %21 = vector.load %arg7[%c0_15, %c0_16] : memref<1x128xf32, #tpu.memory_space<vmem>>, vector<1x128xf32>
    %22 = vector.broadcast %21 : vector<1x128xf32> to vector<2x128xf32>
    %23 = arith.addf %20, %22 : vector<2x128xf32>
    %c0_17 = arith.constant 0 : index
    %c0_18 = arith.constant 0 : index
    %24 = vector.load %arg8[%c0_17, %c0_18] : memref<2x128xf32, #tpu.memory_space<vmem>>, vector<2x128xf32>
    tpu.vector_store %arg8[%c0_17, %c0_18], %23 {strides = array<i32>} : memref<2x128xf32, #tpu.memory_space<vmem>>, vector<2x128xf32>,
    return
  }
  func.func @transform_0(%arg0: i32) -> (i32, i32) {
    %c0_i32 = arith.constant 0 : i32
    %c0_i32_0 = arith.constant 0 : i32
    return %arg0, %c0_i32 : i32, i32
  }
  func.func @transform_1(%arg0: i32) -> (i32, i32) {
    %c0_i32 = arith.constant 0 : i32
    %c0_i32_0 = arith.constant 0 : i32
    %c0_i32_1 = arith.constant 0 : i32
    return %c0_i32, %c0_i32_0 : i32, i32
  }
  func.func @transform_2(%arg0: i32) -> (i32, i32) {
    %c0_i32 = arith.constant 0 : i32
    %c0_i32_0 = arith.constant 0 : i32
    %c0_i32_1 = arith.constant 0 : i32
    return %c0_i32, %c0_i32_0 : i32, i32
  }
  func.func @transform_3(%arg0: i32) -> (i32, i32) {
    %c0_i32 = arith.constant 0 : i32
    %c0_i32_0 = arith.constant 0 : i32
    %c0_i32_1 = arith.constant 0 : i32
    return %c0_i32, %c0_i32_0 : i32, i32
  }
  func.func @transform_4(%arg0: i32) -> (i32, i32) {
    %c0_i32 = arith.constant 0 : i32
    %c0_i32_0 = arith.constant 0 : i32
    %c0_i32_1 = arith.constant 0 : i32
    return %c0_i32, %c0_i32_0 : i32, i32
  }
  func.func @transform_5(%arg0: i32) -> (i32, i32) {
    %c0_i32 = arith.constant 0 : i32
    %c0_i32_0 = arith.constant 0 : i32
    %c0_i32_1 = arith.constant 0 : i32
    return %c0_i32, %c0_i32_0 : i32, i32
  }
  func.func @transform_6(%arg0: i32) -> (i32, i32) {
    %c0_i32 = arith.constant 0 : i32
    %c0_i32_0 = arith.constant 0 : i32
    %c0_i32_1 = arith.constant 0 : i32
    return %c0_i32, %c0_i32_0 : i32, i32
  }
  func.func @transform_7(%arg0: i32) -> (i32, i32) {
    %c0_i32 = arith.constant 0 : i32
    %c0_i32_0 = arith.constant 0 : i32
    return %arg0, %c0_i32 : i32, i32
  }
}

</mosaic_0001>

<llo_original>
// kernel: dueling_dqn_forward.1
$region0: #{dueling_dqn_forward.1}
  #allocation0 [shape = 'u32[]', space=smem, size = 0x4, offset = 0x4, fixed_abs, tag = 'smem constant byte address 0x4 - core index']
  #allocation1 [shape = 'u32[144,128]{1,0:T(1,128)}', space=vmem, size = 0x12000, scoped, tag = 'internal scratch']
  %s0 = inlined_call_operand.vmem [shape: bf16[2,128], index: 0, kind: input, shape index: {}]
  %s1 = inlined_call_operand.hbm [shape: bf16[128,512], index: 1, kind: input, shape index: {}]
  %s2 = inlined_call_operand.vmem [shape: f32[1,512], index: 2, kind: input, shape index: {}]
  %s3 = inlined_call_operand.hbm [shape: bf16[512,1024], index: 3, kind: input, shape index: {}]
  %s4 = inlined_call_operand.vmem [shape: f32[1,1024], index: 4, kind: input, shape index: {}]
  %s5 = inlined_call_operand.hbm [shape: bf16[1024,128], index: 5, kind: input, shape index: {}]
  %s6 = inlined_call_operand.vmem [shape: f32[1,128], index: 6, kind: input, shape index: {}]
  %s7 = inlined_call_operand.hbm [shape: f32[2,128], index: 7, kind: output, shape index: {}]
  %s8 = sld [smem:[#allocation0]]
  $region50: #{dueling_dqn_forward.1} parent=0
    _
  %s10 = ssub.s32 1, %s8
  %s11 = scalar_select 0, %s10, %s8
  $region1: #{dueling_dqn_forward.1} parent=0
    #allocation2 [shape = 'u8[131072]{0}', space=vmem, size = 0x20000, scoped, tag = 'input window, operand 1, single buffered']
    #allocation3 [shape = 's32[1]{0}', space=sflag, size = 0x4, scoped, tag = 'scoped memory for dueling_dqn_forward.1']
    #allocation4 [shape = 's32[1]{0}', space=sflag, size = 0x4, scoped, tag = 'scoped memory for dueling_dqn_forward.1']
    #allocation5 [shape = 'u8[1048576]{0}', space=vmem, size = 0x100000, scoped, tag = 'input window, operand 3, single buffered']
    #allocation6 [shape = 's32[1]{0}', space=sflag, size = 0x4, scoped, tag = 'scoped memory for dueling_dqn_forward.1']
    #allocation7 [shape = 'u8[262144]{0}', space=vmem, size = 0x40000, scoped, tag = 'input window, operand 5, single buffered']
    #allocation8 [shape = 'u8[1024]{0}', space=vmem, size = 0x400, scoped, tag = 'output window, operand 0, single buffered']
    %12 = vsyncpa [#allocation3], 0
    %13 = vsyncpa [#allocation6], 0
    %14 = vsyncpa [#allocation4], 0
    // Predicated region
    $region2: #{dueling_dqn_forward.1} parent=1 // pred_check
      _
    $region3: #{dueling_dqn_forward.1} parent=1 // pred_check_branch
      %16 = sbr.rel (0) target = $region5
    $region4: #{dueling_dqn_forward.1} parent=1 // pred_region
      _
    $region5: #{dueling_dqn_forward.1} parent=1 // pred_fallthru
      _
    // Predicated region
    $region6: #{dueling_dqn_forward.1} parent=1 // pred_check
      _
    $region7: #{dueling_dqn_forward.1} parent=1 // pred_check_branch
      %18 = sbr.rel (0) target = $region9
    $region8: #{dueling_dqn_forward.1} parent=1 // pred_region
      %s20 = ssub.s32 4096, 4096
      %21 = vsyncadd [#allocation3], %s20
      %s22 = sshll.u32 [#allocation2], 4
      %s23 = int_to_ptr.vmem [resolvable:$true] %s22
      %28 = dma.hbm_to_vmem [thread:$0]  %s1, 4096, %s23, [#allocation3], 256, 256, 16
    $region9: #{dueling_dqn_forward.1} parent=1 // pred_fallthru
      _
    // Predicated region
    $region10: #{dueling_dqn_forward.1} parent=1 // pred_check
      _
    $region11: #{dueling_dqn_forward.1} parent=1 // pred_check_branch
      %30 = sbr.rel (0) target = $region13
    $region12: #{dueling_dqn_forward.1} parent=1 // pred_region
      _
    $region13: #{dueling_dqn_forward.1} parent=1 // pred_fallthru
      _
    // Predicated region
    $region14: #{dueling_dqn_forward.1} parent=1 // pred_check
      _
    $region15: #{dueling_dqn_forward.1} parent=1 // pred_check_branch
      %32 = sbr.rel (0) target = $region17
    $region16: #{dueling_dqn_forward.1} parent=1 // pred_region
      %s34 = ssub.s32 32768, 32768
      %35 = vsyncadd [#allocation6], %s34
      %s36 = sshll.u32 [#allocation5], 4
      %s37 = int_to_ptr.vmem [resolvable:$true] %s36
      %42 = dma.hbm_to_vmem [thread:$0]  %s3, 32768, %s37, [#allocation6], 512, 512, 32
    $region17: #{dueling_dqn_forward.1} parent=1 // pred_fallthru
      _
    // Predicated region
    $region18: #{dueling_dqn_forward.1} parent=1 // pred_check
      _
    $region19: #{dueling_dqn_forward.1} parent=1 // pred_check_branch
      %44 = sbr.rel (0) target = $region21
    $region20: #{dueling_dqn_forward.1} parent=1 // pred_region
      _
    $region21: #{dueling_dqn_forward.1} parent=1 // pred_fallthru
      _
    // Predicated region
    $region22: #{dueling_dqn_forward.1} parent=1 // pred_check
      _
    $region23: #{dueling_dqn_forward.1} parent=1 // pred_check_branch
      %46 = sbr.rel (0) target = $region25
    $region24: #{dueling_dqn_forward.1} parent=1 // pred_region
      %s48 = ssub.s32 8192, 8192
      %49 = vsyncadd [#allocation6], %s48
      %s50 = sshll.u32 [#allocation7], 4
      %s51 = int_to_ptr.vmem [resolvable:$true] %s50
      %56 = dma.hbm_to_vmem [thread:$0]  %s5, 8192, %s51, [#allocation6], 64, 64, 4
    $region25: #{dueling_dqn_forward.1} parent=1 // pred_fallthru
      _
    // Predicated region
    $region26: #{dueling_dqn_forward.1} parent=1 // pred_check
      _
    $region27: #{dueling_dqn_forward.1} parent=1 // pred_check_branch
      %58 = sbr.rel (0) target = $region29
    $region28: #{dueling_dqn_forward.1} parent=1 // pred_region
      _
    $region29: #{dueling_dqn_forward.1} parent=1 // pred_fallthru
      _
    // Predicated region
    $region30: #{dueling_dqn_forward.1} parent=1 // pred_check
      _
    $region31: #{dueling_dqn_forward.1} parent=1 // pred_check_branch
      %60 = sbr.rel (0) target = $region33
    $region32: #{dueling_dqn_forward.1} parent=1 // pred_region
      %61 = dma.done [#allocation3], 4096
    $region33: #{dueling_dqn_forward.1} parent=1 // pred_fallthru
      _
    // Predicated region
    $region34: #{dueling_dqn_forward.1} parent=1 // pred_check
      _
    $region35: #{dueling_dqn_forward.1} parent=1 // pred_check_branch
      %63 = sbr.rel (0) target = $region37
    $region36: #{dueling_dqn_forward.1} parent=1 // pred_region
      %64 = dma.done [#allocation6], 32768
    $region37: #{dueling_dqn_forward.1} parent=1 // pred_fallthru
      _
    // Predicated region
    $region38: #{dueling_dqn_forward.1} parent=1 // pred_check
      _
    $region39: #{dueling_dqn_forward.1} parent=1 // pred_check_branch
      %66 = sbr.rel (0) target = $region41
    $region40: #{dueling_dqn_forward.1} parent=1 // pred_region
      %67 = dma.done [#allocation6], 8192
    $region41: #{dueling_dqn_forward.1} parent=1 // pred_fallthru
      _
    %v69 = vld [vmem:[%s0] sm:$0x1]
    %v70 = vld [vmem:[#allocation2] sm:$0xff]
    %v71 = vld [vmem:[#allocation2 + $0x8] sm:$0xff]
    %v72 = vld [vmem:[#allocation2 + $0x10] sm:$0xff]
    %v73 = vld [vmem:[#allocation2 + $0x18] sm:$0xff]
    %v74 = vld [vmem:[#allocation2 + $0x20] sm:$0xff]
    %v75 = vld [vmem:[#allocation2 + $0x28] sm:$0xff]
    %v76 = vld [vmem:[#allocation2 + $0x30] sm:$0xff]
    %v77 = vld [vmem:[#allocation2 + $0x38] sm:$0xff]
    %v78 = vld [vmem:[#allocation2 + $0x40] sm:$0xff]
    %v79 = vld [vmem:[#allocation2 + $0x48] sm:$0xff]
    %v80 = vld [vmem:[#allocation2 + $0x50] sm:$0xff]
    %v81 = vld [vmem:[#allocation2 + $0x58] sm:$0xff]
    %v82 = vld [vmem:[#allocation2 + $0x60] sm:$0xff]
    %v83 = vld [vmem:[#allocation2 + $0x68] sm:$0xff]
    %v84 = vld [vmem:[#allocation2 + $0x70] sm:$0xff]
    %v85 = vld [vmem:[#allocation2 + $0x78] sm:$0xff]
    %v86 = vld [vmem:[#allocation2 + $0x80] sm:$0xff]
    %v87 = vld [vmem:[#allocation2 + $0x88] sm:$0xff]
    %v88 = vld [vmem:[#allocation2 + $0x90] sm:$0xff]
    %v89 = vld [vmem:[#allocation2 + $0x98] sm:$0xff]
    %v90 = vld [vmem:[#allocation2 + $0xa0] sm:$0xff]
    %v91 = vld [vmem:[#allocation2 + $0xa8] sm:$0xff]
    %v92 = vld [vmem:[#allocation2 + $0xb0] sm:$0xff]
    %v93 = vld [vmem:[#allocation2 + $0xb8] sm:$0xff]
    %v94 = vld [vmem:[#allocation2 + $0xc0] sm:$0xff]
    %v95 = vld [vmem:[#allocation2 + $0xc8] sm:$0xff]
    %v96 = vld [vmem:[#allocation2 + $0xd0] sm:$0xff]
    %v97 = vld [vmem:[#allocation2 + $0xd8] sm:$0xff]
    %v98 = vld [vmem:[#allocation2 + $0xe0] sm:$0xff]
    %v99 = vld [vmem:[#allocation2 + $0xe8] sm:$0xff]
    %v100 = vld [vmem:[#allocation2 + $0xf0] sm:$0xff]
    %v101 = vld [vmem:[#allocation2 + $0xf8] sm:$0xff]
    %v134 = vunpack.c.l.b16 %v70
    %v135 = vunpack.c.h.b16 %v70
    %v136 = vunpack.c.l.b16 %v71
    %v137 = vunpack.c.h.b16 %v71
    %v138 = vunpack.c.l.b16 %v72
    %v139 = vunpack.c.h.b16 %v72
    %v140 = vunpack.c.l.b16 %v73
    %v141 = vunpack.c.h.b16 %v73
    %v142 = vunpack.c.l.b16 %v74
    %v143 = vunpack.c.h.b16 %v74
    %v144 = vunpack.c.l.b16 %v75
    %v145 = vunpack.c.h.b16 %v75
    %v146 = vunpack.c.l.b16 %v76
    %v147 = vunpack.c.h.b16 %v76
    %v148 = vunpack.c.l.b16 %v77
    %v149 = vunpack.c.h.b16 %v77
    %v150 = vunpack.c.l.b16 %v78
    %v151 = vunpack.c.h.b16 %v78
    %v152 = vunpack.c.l.b16 %v79
    %v153 = vunpack.c.h.b16 %v79
    %v154 = vunpack.c.l.b16 %v80
    %v155 = vunpack.c.h.b16 %v80
    %v156 = vunpack.c.l.b16 %v81
    %v157 = vunpack.c.h.b16 %v81
    %v158 = vunpack.c.l.b16 %v82
    %v159 = vunpack.c.h.b16 %v82
    %v160 = vunpack.c.l.b16 %v83
    %v161 = vunpack.c.h.b16 %v83
    %v162 = vunpack.c.l.b16 %v84
    %v163 = vunpack.c.h.b16 %v84
    %v164 = vunpack.c.l.b16 %v85
    %v165 = vunpack.c.h.b16 %v85
    %v166 = vunpack.c.l.b16 %v86
    %v167 = vunpack.c.h.b16 %v86
    %v168 = vunpack.c.l.b16 %v87
    %v169 = vunpack.c.h.b16 %v87
    %v170 = vunpack.c.l.b16 %v88
    %v171 = vunpack.c.h.b16 %v88
    %v172 = vunpack.c.l.b16 %v89
    %v173 = vunpack.c.h.b16 %v89
    %v174 = vunpack.c.l.b16 %v90
    %v175 = vunpack.c.h.b16 %v90
    %v176 = vunpack.c.l.b16 %v91
    %v177 = vunpack.c.h.b16 %v91
    %v178 = vunpack.c.l.b16 %v92
    %v179 = vunpack.c.h.b16 %v92
    %v180 = vunpack.c.l.b16 %v93
    %v181 = vunpack.c.h.b16 %v93
    %v182 = vunpack.c.l.b16 %v94
    %v183 = vunpack.c.h.b16 %v94
    %v184 = vunpack.c.l.b16 %v95
    %v185 = vunpack.c.h.b16 %v95
    %v186 = vunpack.c.l.b16 %v96
    %v187 = vunpack.c.h.b16 %v96
    %v188 = vunpack.c.l.b16 %v97
    %v189 = vunpack.c.h.b16 %v97
    %v190 = vunpack.c.l.b16 %v98
    %v191 = vunpack.c.h.b16 %v98
    %v192 = vunpack.c.l.b16 %v99
    %v193 = vunpack.c.h.b16 %v99
    %v194 = vunpack.c.l.b16 %v100
    %v195 = vunpack.c.h.b16 %v100
    %v196 = vunpack.c.l.b16 %v101
    %v197 = vunpack.c.h.b16 %v101
    %v198 = vpack.c.b16 %v138, %v134
    %v199 = vpack.c.b16 %v139, %v135
    %v200 = vpack.c.b16 %v140, %v136
    %v201 = vpack.c.b16 %v141, %v137
    %v202 = vpack.c.b16 %v146, %v142
    %v203 = vpack.c.b16 %v147, %v143
    %v204 = vpack.c.b16 %v148, %v144
    %v205 = vpack.c.b16 %v149, %v145
    %v206 = vpack.c.b16 %v154, %v150
    %v207 = vpack.c.b16 %v155, %v151
    %v208 = vpack.c.b16 %v156, %v152
    %v209 = vpack.c.b16 %v157, %v153
    %v210 = vpack.c.b16 %v162, %v158
    %v211 = vpack.c.b16 %v163, %v159
    %v212 = vpack.c.b16 %v164, %v160
    %v213 = vpack.c.b16 %v165, %v161
    %v214 = vpack.c.b16 %v170, %v166
    %v215 = vpack.c.b16 %v171, %v167
    %v216 = vpack.c.b16 %v172, %v168
    %v217 = vpack.c.b16 %v173, %v169
    %v218 = vpack.c.b16 %v178, %v174
    %v219 = vpack.c.b16 %v179, %v175
    %v220 = vpack.c.b16 %v180, %v176
    %v221 = vpack.c.b16 %v181, %v177
    %v222 = vpack.c.b16 %v186, %v182
    %v223 = vpack.c.b16 %v187, %v183
    %v224 = vpack.c.b16 %v188, %v184
    %v225 = vpack.c.b16 %v189, %v185
    %v226 = vpack.c.b16 %v194, %v190
    %v227 = vpack.c.b16 %v195, %v191
    %v228 = vpack.c.b16 %v196, %v192
    %v229 = vpack.c.b16 %v197, %v193
    %262 = vmatprep.subr.bf16.mxu0 %v199
    %263 = vmatpush1.bf16.msra.mxu0 %v198
    %264 = vmatprep.subr.bf16.mxu0 %v203
    %265 = vmatpush1.bf16.msra.mxu0 %v202
    %266 = vmatprep.subr.bf16.mxu0 %v207
    %267 = vmatpush1.bf16.msra.mxu0 %v206
    %268 = vmatprep.subr.bf16.mxu0 %v211
    %269 = vmatpush1.bf16.msra.mxu0 %v210
    %270 = vmatprep.subr.bf16.mxu0 %v215
    %271 = vmatpush1.bf16.msra.mxu0 %v214
    %272 = vmatprep.subr.bf16.mxu0 %v219
    %273 = vmatpush1.bf16.msra.mxu0 %v218
    %274 = vmatprep.subr.bf16.mxu0 %v223
    %275 = vmatpush1.bf16.msra.mxu0 %v222
    %276 = vmatprep.subr.bf16.mxu0 %v227
    %277 = vmatpush1.bf16.msra.mxu0 %v226
    %278 = vmatprep.subr.bf16.mxu0 0
    %279 = vmatpush1.bf16.msra.mxu0 0
    %280 = vmatprep.subr.bf16.mxu0 0
    %281 = vmatpush1.bf16.msra.mxu0 0
    %282 = vmatprep.subr.bf16.mxu0 0
    %283 = vmatpush1.bf16.msra.mxu0 0
    %284 = vmatprep.subr.bf16.mxu0 0
    %285 = vmatpush1.bf16.msra.mxu0 0
    %286 = vmatprep.subr.bf16.mxu0 0
    %287 = vmatpush1.bf16.msra.mxu0 0
    %288 = vmatprep.subr.bf16.mxu0 0
    %289 = vmatpush1.bf16.msra.mxu0 0
    %290 = vmatprep.subr.bf16.mxu0 0
    %291 = vmatpush1.bf16.msra.mxu0 0
    %292 = vmatprep.subr.bf16.mxu0 0
    %293 = vmatpush1.bf16.msra.mxu0 0
    %294 = vmatprep.mubr.bf16.mxu0 0
    %295 = vmatmul.mubr.bf16.gmra.mrb[0].mxu0 %v69
    %v296 = vpop.f32.mrb[0].mxu0
    %v297 = vadd.f32 0.0, %v296
    %v298 = vpop.f32.mrb[0].mxu0
    %v299 = vadd.f32 0.0, %v298
    %v300 = vpop.f32.mrb[0].mxu0
    %v301 = vpop.f32.mrb[0].mxu0
    %302 = vdwg.mxu0
    %303 = vmatprep.subr.bf16.mxu0 %v201
    %304 = vmatpush1.bf16.msra.mxu0 %v200
    %305 = vmatprep.subr.bf16.mxu0 %v205
    %306 = vmatpush1.bf16.msra.mxu0 %v204
    %307 = vmatprep.subr.bf16.mxu0 %v209
    %308 = vmatpush1.bf16.msra.mxu0 %v208
    %309 = vmatprep.subr.bf16.mxu0 %v213
    %310 = vmatpush1.bf16.msra.mxu0 %v212
    %311 = vmatprep.subr.bf16.mxu0 %v217
    %312 = vmatpush1.bf16.msra.mxu0 %v216
    %313 = vmatprep.subr.bf16.mxu0 %v221
    %314 = vmatpush1.bf16.msra.mxu0 %v220
    %315 = vmatprep.subr.bf16.mxu0 %v225
    %316 = vmatpush1.bf16.msra.mxu0 %v224
    %317 = vmatprep.subr.bf16.mxu0 %v229
    %318 = vmatpush1.bf16.msra.mxu0 %v228
    %319 = vmatprep.subr.bf16.mxu0 0
    %320 = vmatpush1.bf16.msra.mxu0 0
    %321 = vmatprep.subr.bf16.mxu0 0
    %322 = vmatpush1.bf16.msra.mxu0 0
    %323 = vmatprep.subr.bf16.mxu0 0
    %324 = vmatpush1.bf16.msra.mxu0 0
    %325 = vmatprep.subr.bf16.mxu0 0
    %326 = vmatpush1.bf16.msra.mxu0 0
    %327 = vmatprep.subr.bf16.mxu0 0
    %328 = vmatpush1.bf16.msra.mxu0 0
    %329 = vmatprep.subr.bf16.mxu0 0
    %330 = vmatpush1.bf16.msra.mxu0 0
    %331 = vmatprep.subr.bf16.mxu0 0
    %332 = vmatpush1.bf16.msra.mxu0 0
    %333 = vmatprep.subr.bf16.mxu0 0
    %334 = vmatpush1.bf16.msra.mxu0 0
    %335 = vmatprep.mubr.bf16.mxu0 0
    %336 = vmatmul.mubr.bf16.gmra.mrb[0].mxu0 %v69
    %v337 = vpop.f32.mrb[0].mxu0
    %v338 = vadd.f32 0.0, %v337
    %v339 = vpop.f32.mrb[0].mxu0
    %v340 = vadd.f32 0.0, %v339
    %v341 = vpop.f32.mrb[0].mxu0
    %v342 = vpop.f32.mrb[0].mxu0
    %343 = vdwg.mxu0
    %v344 = vpack.c.bf16 %v297, %v297
    %v345 = vpack.c.bf16 %v299, %v299
    %v346 = vpack.c.bf16 %v338, %v338
    %v347 = vpack.c.bf16 %v340, %v340
    %v348 = vld [vmem:[%s2] sm:$0xf]
    %v350 = vlaneseq
    %v351 = vshrl.u32 %v350, 7
    %v352 = vsub.s32 0, %v351
    %v353 = vrot.slane %v348, %v352
    %v354 = vlaneseq
    %v355 = vshrl.u32 %v354, 7
    %v356 = vsub.s32 1, %v355
    %v357 = vrot.slane %v348, %v356
    %v358 = vlaneseq
    %v359 = vshrl.u32 %v358, 7
    %v360 = vsub.s32 2, %v359
    %v361 = vrot.slane %v348, %v360
    %v362 = vlaneseq
    %v363 = vshrl.u32 %v362, 7
    %v364 = vsub.s32 3, %v363
    %v365 = vrot.slane %v348, %v364
    %v370 = vpack.c.bf16 %v353, %v353
    %v371 = vpack.c.bf16 %v357, %v357
    %v372 = vpack.c.bf16 %v361, %v361
    %v373 = vpack.c.bf16 %v365, %v365
    %v375 = vpack.i.b16 %v370, %v370
    %v377 = vlaneseq
    %v378 = vshrl.u32 %v377, 7
    %v379 = vsub.s32 0, %v378
    %v380 = vrot.slane %v375, %v379
    %v382 = vpack.i.b16 %v371, %v371
    %v384 = vlaneseq
    %v385 = vshrl.u32 %v384, 7
    %v386 = vsub.s32 0, %v385
    %v387 = vrot.slane %v382, %v386
    %v389 = vpack.i.b16 %v372, %v372
    %v391 = vlaneseq
    %v392 = vshrl.u32 %v391, 7
    %v393 = vsub.s32 0, %v392
    %v394 = vrot.slane %v389, %v393
    %v396 = vpack.i.b16 %v373, %v373
    %v398 = vlaneseq
    %v399 = vshrl.u32 %v398, 7
    %v400 = vsub.s32 0, %v399
    %v401 = vrot.slane %v396, %v400
    %v402 = vadd.bf16 %v344, %v380
    %v403 = vadd.bf16 %v345, %v387
    %v404 = vadd.bf16 %v346, %v394
    %v405 = vadd.bf16 %v347, %v401
    %v406 = vmax.bf16 %v402, 0
    %v407 = vmax.bf16 %v403, 0
    %v408 = vmax.bf16 %v404, 0
    %v409 = vmax.bf16 %v405, 0
    %v410 = vld [vmem:[#allocation5] sm:$0xff]
    %v411 = vld [vmem:[#allocation5 + $0x8] sm:$0xff]
    %v412 = vld [vmem:[#allocation5 + $0x10] sm:$0xff]
    %v413 = vld [vmem:[#allocation5 + $0x18] sm:$0xff]
    %v414 = vld [vmem:[#allocation5 + $0x20] sm:$0xff]
    %v415 = vld [vmem:[#allocation5 + $0x28] sm:$0xff]
    %v416 = vld [vmem:[#allocation5 + $0x30] sm:$0xff]
    %v417 = vld [vmem:[#allocation5 + $0x38] sm:$0xff]
    %v418 = vld [vmem:[#allocation5 + $0x40] sm:$0xff]
    %v419 = vld [vmem:[#allocation5 + $0x48] sm:$0xff]
    %v420 = vld [vmem:[#allocation5 + $0x50] sm:$0xff]
    %v421 = vld [vmem:[#allocation5 + $0x58] sm:$0xff]
    %v422 = vld [vmem:[#allocation5 + $0x60] sm:$0xff]
    %v423 = vld [vmem:[#allocation5 + $0x68] sm:$0xff]
    %v424 = vld [vmem:[#allocation5 + $0x70] sm:$0xff]
    %v425 = vld [vmem:[#allocation5 + $0x78] sm:$0xff]
    %v426 = vld [vmem:[#allocation5 + $0x80] sm:$0xff]
    %v427 = vld [vmem:[#allocation5 + $0x88] sm:$0xff]
    %v428 = vld [vmem:[#allocation5 + $0x90] sm:$0xff]
    %v429 = vld [vmem:[#allocation5 + $0x98] sm:$0xff]
    %v430 = vld [vmem:[#allocation5 + $0xa0] sm:$0xff]
    %v431 = vld [vmem:[#allocation5 + $0xa8] sm:$0xff]
    %v432 = vld [vmem:[#allocation5 + $0xb0] sm:$0xff]
    %v433 = vld [vmem:[#allocation5 + $0xb8] sm:$0xff]
    %v434 = vld [vmem:[#allocation5 + $0xc0] sm:$0xff]
    %v435 = vld [vmem:[#allocation5 + $0xc8] sm:$0xff]
    %v436 = vld [vmem:[#allocation5 + $0xd0] sm:$0xff]
    %v437 = vld [vmem:[#allocation5 + $0xd8] sm:$0xff]
    %v438 = vld [vmem:[#allocation5 + $0xe0] sm:$0xff]
    %v439 = vld [vmem:[#allocation5 + $0xe8] sm:$0xff]
    %v440 = vld [vmem:[#allocation5 + $0xf0] sm:$0xff]
    %v441 = vld [vmem:[#allocation5 + $0xf8] sm:$0xff]
    %v442 = vld [vmem:[#allocation5 + $0x100] sm:$0xff]
    %v443 = vld [vmem:[#allocation5 + $0x108] sm:$0xff]
    %v444 = vld [vmem:[#allocation5 + $0x110] sm:$0xff]
    %v445 = vld [vmem:[#allocation5 + $0x118] sm:$0xff]
    %v446 = vld [vmem:[#allocation5 + $0x120] sm:$0xff]
    %v447 = vld [vmem:[#allocation5 + $0x128] sm:$0xff]
    %v448 = vld [vmem:[#allocation5 + $0x130] sm:$0xff]
    %v449 = vld [vmem:[#allocation5 + $0x138] sm:$0xff]
    %v450 = vld [vmem:[#allocation5 + $0x140] sm:$0xff]
    %v451 = vld [vmem:[#allocation5 + $0x148] sm:$0xff]
    %v452 = vld [vmem:[#allocation5 + $0x150] sm:$0xff]
    %v453 = vld [vmem:[#allocation5 + $0x158] sm:$0xff]
    %v454 = vld [vmem:[#allocation5 + $0x160] sm:$0xff]
    %v455 = vld [vmem:[#allocation5 + $0x168] sm:$0xff]
    %v456 = vld [vmem:[#allocation5 + $0x170] sm:$0xff]
    %v457 = vld [vmem:[#allocation5 + $0x178] sm:$0xff]
    %v458 = vld [vmem:[#allocation5 + $0x180] sm:$0xff]
    %v459 = vld [vmem:[#allocation5 + $0x188] sm:$0xff]
    %v460 = vld [vmem:[#allocation5 + $0x190] sm:$0xff]
    %v461 = vld [vmem:[#allocation5 + $0x198] sm:$0xff]
    %v462 = vld [vmem:[#allocation5 + $0x1a0] sm:$0xff]
    %v463 = vld [vmem:[#allocation5 + $0x1a8] sm:$0xff]
    %v464 = vld [vmem:[#allocation5 + $0x1b0] sm:$0xff]
    %v465 = vld [vmem:[#allocation5 + $0x1b8] sm:$0xff]
    %v466 = vld [vmem:[#allocation5 + $0x1c0] sm:$0xff]
    %v467 = vld [vmem:[#allocation5 + $0x1c8] sm:$0xff]
    %v468 = vld [vmem:[#allocation5 + $0x1d0] sm:$0xff]
    %v469 = vld [vmem:[#allocation5 + $0x1d8] sm:$0xff]
    %v470 = vld [vmem:[#allocation5 + $0x1e0] sm:$0xff]
    %v471 = vld [vmem:[#allocation5 + $0x1e8] sm:$0xff]
    %v472 = vld [vmem:[#allocation5 + $0x1f0] sm:$0xff]
    %v473 = vld [vmem:[#allocation5 + $0x1f8] sm:$0xff]
    %v474 = vld [vmem:[#allocation5 + $0x200] sm:$0xff]
    %v475 = vld [vmem:[#allocation5 + $0x208] sm:$0xff]
    %v476 = vld [vmem:[#allocation5 + $0x210] sm:$0xff]
    %v477 = vld [vmem:[#allocation5 + $0x218] sm:$0xff]
    %v478 = vld [vmem:[#allocation5 + $0x220] sm:$0xff]
    %v479 = vld [vmem:[#allocation5 + $0x228] sm:$0xff]
    %v480 = vld [vmem:[#allocation5 + $0x230] sm:$0xff]
    %v481 = vld [vmem:[#allocation5 + $0x238] sm:$0xff]
    %v482 = vld [vmem:[#allocation5 + $0x240] sm:$0xff]
    %v483 = vld [vmem:[#allocation5 + $0x248] sm:$0xff]
    %v484 = vld [vmem:[#allocation5 + $0x250] sm:$0xff]
    %v485 = vld [vmem:[#allocation5 + $0x258] sm:$0xff]
    %v486 = vld [vmem:[#allocation5 + $0x260] sm:$0xff]
    %v487 = vld [vmem:[#allocation5 + $0x268] sm:$0xff]
    %v488 = vld [vmem:[#allocation5 + $0x270] sm:$0xff]
    %v489 = vld [vmem:[#allocation5 + $0x278] sm:$0xff]
    %v490 = vld [vmem:[#allocation5 + $0x280] sm:$0xff]
    %v491 = vld [vmem:[#allocation5 + $0x288] sm:$0xff]
    %v492 = vld [vmem:[#allocation5 + $0x290] sm:$0xff]
    %v493 = vld [vmem:[#allocation5 + $0x298] sm:$0xff]
    %v494 = vld [vmem:[#allocation5 + $0x2a0] sm:$0xff]
    %v495 = vld [vmem:[#allocation5 + $0x2a8] sm:$0xff]
    %v496 = vld [vmem:[#allocation5 + $0x2b0] sm:$0xff]
    %v497 = vld [vmem:[#allocation5 + $0x2b8] sm:$0xff]
    %v498 = vld [vmem:[#allocation5 + $0x2c0] sm:$0xff]
    %v499 = vld [vmem:[#allocation5 + $0x2c8] sm:$0xff]
    %v500 = vld [vmem:[#allocation5 + $0x2d0] sm:$0xff]
    %v501 = vld [vmem:[#allocation5 + $0x2d8] sm:$0xff]
    %v502 = vld [vmem:[#allocation5 + $0x2e0] sm:$0xff]
    %v503 = vld [vmem:[#allocation5 + $0x2e8] sm:$0xff]
    %v504 = vld [vmem:[#allocation5 + $0x2f0] sm:$0xff]
    %v505 = vld [vmem:[#allocation5 + $0x2f8] sm:$0xff]
    %v506 = vld [vmem:[#allocation5 + $0x300] sm:$0xff]
    %v507 = vld [vmem:[#allocation5 + $0x308] sm:$0xff]
    %v508 = vld [vmem:[#allocation5 + $0x310] sm:$0xff]
    %v509 = vld [vmem:[#allocation5 + $0x318] sm:$0xff]
    %v510 = vld [vmem:[#allocation5 + $0x320] sm:$0xff]
    %v511 = vld [vmem:[#allocation5 + $0x328] sm:$0xff]
    %v512 = vld [vmem:[#allocation5 + $0x330] sm:$0xff]
    %v513 = vld [vmem:[#allocation5 + $0x338] sm:$0xff]
    %v514 = vld [vmem:[#allocation5 + $0x340] sm:$0xff]
    %v515 = vld [vmem:[#allocation5 + $0x348] sm:$0xff]
    %v516 = vld [vmem:[#allocation5 + $0x350] sm:$0xff]
    %v517 = vld [vmem:[#allocation5 + $0x358] sm:$0xff]
    %v518 = vld [vmem:[#allocation5 + $0x360] sm:$0xff]
    %v519 = vld [vmem:[#allocation5 + $0x368] sm:$0xff]
    %v520 = vld [vmem:[#allocation5 + $0x370] sm:$0xff]
    %v521 = vld [vmem:[#allocation5 + $0x378] sm:$0xff]
    %v522 = vld [vmem:[#allocation5 + $0x380] sm:$0xff]
    %v523 = vld [vmem:[#allocation5 + $0x388] sm:$0xff]
    %v524 = vld [vmem:[#allocation5 + $0x390] sm:$0xff]
    %v525 = vld [vmem:[#allocation5 + $0x398] sm:$0xff]
    %v526 = vld [vmem:[#allocation5 + $0x3a0] sm:$0xff]
    %v527 = vld [vmem:[#allocation5 + $0x3a8] sm:$0xff]
    %v528 = vld [vmem:[#allocation5 + $0x3b0] sm:$0xff]
    %v529 = vld [vmem:[#allocation5 + $0x3b8] sm:$0xff]
    %v530 = vld [vmem:[#allocation5 + $0x3c0] sm:$0xff]
    %v531 = vld [vmem:[#allocation5 + $0x3c8] sm:$0xff]
    %v532 = vld [vmem:[#allocation5 + $0x3d0] sm:$0xff]
    %v533 = vld [vmem:[#allocation5 + $0x3d8] sm:$0xff]
    %v534 = vld [vmem:[#allocation5 + $0x3e0] sm:$0xff]
    %v535 = vld [vmem:[#allocation5 + $0x3e8] sm:$0xff]
    %v536 = vld [vmem:[#allocation5 + $0x3f0] sm:$0xff]
    %v537 = vld [vmem:[#allocation5 + $0x3f8] sm:$0xff]
    %v538 = vld [vmem:[#allocation5 + $0x400] sm:$0xff]
    %v539 = vld [vmem:[#allocation5 + $0x408] sm:$0xff]
    %v540 = vld [vmem:[#allocation5 + $0x410] sm:$0xff]
    %v541 = vld [vmem:[#allocation5 + $0x418] sm:$0xff]
    %v542 = vld [vmem:[#allocation5 + $0x420] sm:$0xff]
    %v543 = vld [vmem:[#allocation5 + $0x428] sm:$0xff]
    %v544 = vld [vmem:[#allocation5 + $0x430] sm:$0xff]
    %v545 = vld [vmem:[#allocation5 + $0x438] sm:$0xff]
    %v546 = vld [vmem:[#allocation5 + $0x440] sm:$0xff]
    %v547 = vld [vmem:[#allocation5 + $0x448] sm:$0xff]
    %v548 = vld [vmem:[#allocation5 + $0x450] sm:$0xff]
    %v549 = vld [vmem:[#allocation5 + $0x458] sm:$0xff]
    %v550 = vld [vmem:[#allocation5 + $0x460] sm:$0xff]
    %v551 = vld [vmem:[#allocation5 + $0x468] sm:$0xff]
    %v552 = vld [vmem:[#allocation5 + $0x470] sm:$0xff]
    %v553 = vld [vmem:[#allocation5 + $0x478] sm:$0xff]
    %v554 = vld [vmem:[#allocation5 + $0x480] sm:$0xff]
    %v555 = vld [vmem:[#allocation5 + $0x488] sm:$0xff]
    %v556 = vld [vmem:[#allocation5 + $0x490] sm:$0xff]
    %v557 = vld [vmem:[#allocation5 + $0x498] sm:$0xff]
    %v558 = vld [vmem:[#allocation5 + $0x4a0] sm:$0xff]
    %v559 = vld [vmem:[#allocation5 + $0x4a8] sm:$0xff]
    %v560 = vld [vmem:[#allocation5 + $0x4b0] sm:$0xff]
    %v561 = vld [vmem:[#allocation5 + $0x4b8] sm:$0xff]
    %v562 = vld [vmem:[#allocation5 + $0x4c0] sm:$0xff]
    %v563 = vld [vmem:[#allocation5 + $0x4c8] sm:$0xff]
    %v564 = vld [vmem:[#allocation5 + $0x4d0] sm:$0xff]
    %v565 = vld [vmem:[#allocation5 + $0x4d8] sm:$0xff]
    %v566 = vld [vmem:[#allocation5 + $0x4e0] sm:$0xff]
    %v567 = vld [vmem:[#allocation5 + $0x4e8] sm:$0xff]
    %v568 = vld [vmem:[#allocation5 + $0x4f0] sm:$0xff]
    %v569 = vld [vmem:[#allocation5 + $0x4f8] sm:$0xff]
    %v570 = vld [vmem:[#allocation5 + $0x500] sm:$0xff]
    %v571 = vld [vmem:[#allocation5 + $0x508] sm:$0xff]
    %v572 = vld [vmem:[#allocation5 + $0x510] sm:$0xff]
    %v573 = vld [vmem:[#allocation5 + $0x518] sm:$0xff]
    %v574 = vld [vmem:[#allocation5 + $0x520] sm:$0xff]
    %v575 = vld [vmem:[#allocation5 + $0x528] sm:$0xff]
    %v576 = vld [vmem:[#allocation5 + $0x530] sm:$0xff]
    %v577 = vld [vmem:[#allocation5 + $0x538] sm:$0xff]
    %v578 = vld [vmem:[#allocation5 + $0x540] sm:$0xff]
    %v579 = vld [vmem:[#allocation5 + $0x548] sm:$0xff]
    %v580 = vld [vmem:[#allocation5 + $0x550] sm:$0xff]
    %v581 = vld [vmem:[#allocation5 + $0x558] sm:$0xff]
    %v582 = vld [vmem:[#allocation5 + $0x560] sm:$0xff]
    %v583 = vld [vmem:[#allocation5 + $0x568] sm:$0xff]
    %v584 = vld [vmem:[#allocation5 + $0x570] sm:$0xff]
    %v585 = vld [vmem:[#allocation5 + $0x578] sm:$0xff]
    %v586 = vld [vmem:[#allocation5 + $0x580] sm:$0xff]
    %v587 = vld [vmem:[#allocation5 + $0x588] sm:$0xff]
    %v588 = vld [vmem:[#allocation5 + $0x590] sm:$0xff]
    %v589 = vld [vmem:[#allocation5 + $0x598] sm:$0xff]
    %v590 = vld [vmem:[#allocation5 + $0x5a0] sm:$0xff]
    %v591 = vld [vmem:[#allocation5 + $0x5a8] sm:$0xff]
    %v592 = vld [vmem:[#allocation5 + $0x5b0] sm:$0xff]
    %v593 = vld [vmem:[#allocation5 + $0x5b8] sm:$0xff]
    %v594 = vld [vmem:[#allocation5 + $0x5c0] sm:$0xff]
    %v595 = vld [vmem:[#allocation5 + $0x5c8] sm:$0xff]
    %v596 = vld [vmem:[#allocation5 + $0x5d0] sm:$0xff]
    %v597 = vld [vmem:[#allocation5 + $0x5d8] sm:$0xff]
    %v598 = vld [vmem:[#allocation5 + $0x5e0] sm:$0xff]
    %v599 = vld [vmem:[#allocation5 + $0x5e8] sm:$0xff]
    %v600 = vld [vmem:[#allocation5 + $0x5f0] sm:$0xff]
    %v601 = vld [vmem:[#allocation5 + $0x5f8] sm:$0xff]
    %v602 = vld [vmem:[#allocation5 + $0x600] sm:$0xff]
    %v603 = vld [vmem:[#allocation5 + $0x608] sm:$0xff]
    %v604 = vld [vmem:[#allocation5 + $0x610] sm:$0xff]
    %v605 = vld [vmem:[#allocation5 + $0x618] sm:$0xff]
    %v606 = vld [vmem:[#allocation5 + $0x620] sm:$0xff]
    %v607 = vld [vmem:[#allocation5 + $0x628] sm:$0xff]
    %v608 = vld [vmem:[#allocation5 + $0x630] sm:$0xff]
    %v609 = vld [vmem:[#allocation5 + $0x638] sm:$0xff]
    %v610 = vld [vmem:[#allocation5 + $0x640] sm:$0xff]
    %v611 = vld [vmem:[#allocation5 + $0x648] sm:$0xff]
    %v612 = vld [vmem:[#allocation5 + $0x650] sm:$0xff]
    %v613 = vld [vmem:[#allocation5 + $0x658] sm:$0xff]
    %v614 = vld [vmem:[#allocation5 + $0x660] sm:$0xff]
    %v615 = vld [vmem:[#allocation5 + $0x668] sm:$0xff]
    %v616 = vld [vmem:[#allocation5 + $0x670] sm:$0xff]
    %v617 = vld [vmem:[#allocation5 + $0x678] sm:$0xff]
    %v618 = vld [vmem:[#allocation5 + $0x680] sm:$0xff]
    %v619 = vld [vmem:[#allocation5 + $0x688] sm:$0xff]
    %v620 = vld [vmem:[#allocation5 + $0x690] sm:$0xff]
    %v621 = vld [vmem:[#allocation5 + $0x698] sm:$0xff]
    %v622 = vld [vmem:[#allocation5 + $0x6a0] sm:$0xff]
    %v623 = vld [vmem:[#allocation5 + $0x6a8] sm:$0xff]
    %v624 = vld [vmem:[#allocation5 + $0x6b0] sm:$0xff]
    %v625 = vld [vmem:[#allocation5 + $0x6b8] sm:$0xff]
    %v626 = vld [vmem:[#allocation5 + $0x6c0] sm:$0xff]
    %v627 = vld [vmem:[#allocation5 + $0x6c8] sm:$0xff]
    %v628 = vld [vmem:[#allocation5 + $0x6d0] sm:$0xff]
    %v629 = vld [vmem:[#allocation5 + $0x6d8] sm:$0xff]
    %v630 = vld [vmem:[#allocation5 + $0x6e0] sm:$0xff]
    %v631 = vld [vmem:[#allocation5 + $0x6e8] sm:$0xff]
    %v632 = vld [vmem:[#allocation5 + $0x6f0] sm:$0xff]
    %v633 = vld [vmem:[#allocation5 + $0x6f8] sm:$0xff]
    %v634 = vld [vmem:[#allocation5 + $0x700] sm:$0xff]
    %v635 = vld [vmem:[#allocation5 + $0x708] sm:$0xff]
    %v636 = vld [vmem:[#allocation5 + $0x710] sm:$0xff]
    %v637 = vld [vmem:[#allocation5 + $0x718] sm:$0xff]
    %v638 = vld [vmem:[#allocation5 + $0x720] sm:$0xff]
    %v639 = vld [vmem:[#allocation5 + $0x728] sm:$0xff]
    %v640 = vld [vmem:[#allocation5 + $0x730] sm:$0xff]
    %v641 = vld [vmem:[#allocation5 + $0x738] sm:$0xff]
    %v642 = vld [vmem:[#allocation5 + $0x740] sm:$0xff]
    %v643 = vld [vmem:[#allocation5 + $0x748] sm:$0xff]
    %v644 = vld [vmem:[#allocation5 + $0x750] sm:$0xff]
    %v645 = vld [vmem:[#allocation5 + $0x758] sm:$0xff]
    %v646 = vld [vmem:[#allocation5 + $0x760] sm:$0xff]
    %v647 = vld [vmem:[#allocation5 + $0x768] sm:$0xff]
    %v648 = vld [vmem:[#allocation5 + $0x770] sm:$0xff]
    %v649 = vld [vmem:[#allocation5 + $0x778] sm:$0xff]
    %v650 = vld [vmem:[#allocation5 + $0x780] sm:$0xff]
    %v651 = vld [vmem:[#allocation5 + $0x788] sm:$0xff]
    %v652 = vld [vmem:[#allocation5 + $0x790] sm:$0xff]
    %v653 = vld [vmem:[#allocation5 + $0x798] sm:$0xff]
    %v654 = vld [vmem:[#allocation5 + $0x7a0] sm:$0xff]
    %v655 = vld [vmem:[#allocation5 + $0x7a8] sm:$0xff]
    %v656 = vld [vmem:[#allocation5 + $0x7b0] sm:$0xff]
    %v657 = vld [vmem:[#allocation5 + $0x7b8] sm:$0xff]
    %v658 = vld [vmem:[#allocation5 + $0x7c0] sm:$0xff]
    %v659 = vld [vmem:[#allocation5 + $0x7c8] sm:$0xff]
    %v660 = vld [vmem:[#allocation5 + $0x7d0] sm:$0xff]
    %v661 = vld [vmem:[#allocation5 + $0x7d8] sm:$0xff]
    %v662 = vld [vmem:[#allocation5 + $0x7e0] sm:$0xff]
    %v663 = vld [vmem:[#allocation5 + $0x7e8] sm:$0xff]
    %v664 = vld [vmem:[#allocation5 + $0x7f0] sm:$0xff]
    %v665 = vld [vmem:[#allocation5 + $0x7f8] sm:$0xff]
    %v922 = vunpack.c.l.b16 %v410
    %v923 = vunpack.c.h.b16 %v410
    %v924 = vunpack.c.l.b16 %v411
    %v925 = vunpack.c.h.b16 %v411
    %v926 = vunpack.c.l.b16 %v412
    %v927 = vunpack.c.h.b16 %v412
    %v928 = vunpack.c.l.b16 %v413
    %v929 = vunpack.c.h.b16 %v413
    %v930 = vunpack.c.l.b16 %v414
    %v931 = vunpack.c.h.b16 %v414
    %v932 = vunpack.c.l.b16 %v415
    %v933 = vunpack.c.h.b16 %v415
    %v934 = vunpack.c.l.b16 %v416
    %v935 = vunpack.c.h.b16 %v416
    %v936 = vunpack.c.l.b16 %v417
    %v937 = vunpack.c.h.b16 %v417
    %v938 = vunpack.c.l.b16 %v418
    %v939 = vunpack.c.h.b16 %v418
    %v940 = vunpack.c.l.b16 %v419
    %v941 = vunpack.c.h.b16 %v419
    %v942 = vunpack.c.l.b16 %v420
    %v943 = vunpack.c.h.b16 %v420
    %v944 = vunpack.c.l.b16 %v421
    %v945 = vunpack.c.h.b16 %v421
    %v946 = vunpack.c.l.b16 %v422
    %v947 = vunpack.c.h.b16 %v422
    %v948 = vunpack.c.l.b16 %v423
    %v949 = vunpack.c.h.b16 %v423
    %v950 = vunpack.c.l.b16 %v424
    %v951 = vunpack.c.h.b16 %v424
    %v952 = vunpack.c.l.b16 %v425
    %v953 = vunpack.c.h.b16 %v425
    %v954 = vunpack.c.l.b16 %v426
    %v955 = vunpack.c.h.b16 %v426
    %v956 = vunpack.c.l.b16 %v427
    %v957 = vunpack.c.h.b16 %v427
    %v958 = vunpack.c.l.b16 %v428
    %v959 = vunpack.c.h.b16 %v428
    %v960 = vunpack.c.l.b16 %v429
    %v961 = vunpack.c.h.b16 %v429
    %v962 = vunpack.c.l.b16 %v430
    %v963 = vunpack.c.h.b16 %v430
    %v964 = vunpack.c.l.b16 %v431
    %v965 = vunpack.c.h.b16 %v431
    %v966 = vunpack.c.l.b16 %v432
    %v967 = vunpack.c.h.b16 %v432
    %v968 = vunpack.c.l.b16 %v433
    %v969 = vunpack.c.h.b16 %v433
    %v970 = vunpack.c.l.b16 %v434
    %v971 = vunpack.c.h.b16 %v434
    %v972 = vunpack.c.l.b16 %v435
    %v973 = vunpack.c.h.b16 %v435
    %v974 = vunpack.c.l.b16 %v436
    %v975 = vunpack.c.h.b16 %v436
    %v976 = vunpack.c.l.b16 %v437
    %v977 = vunpack.c.h.b16 %v437
    %v978 = vunpack.c.l.b16 %v438
    %v979 = vunpack.c.h.b16 %v438
    %v980 = vunpack.c.l.b16 %v439
    %v981 = vunpack.c.h.b16 %v439
    %v982 = vunpack.c.l.b16 %v440
    %v983 = vunpack.c.h.b16 %v440
    %v984 = vunpack.c.l.b16 %v441
    %v985 = vunpack.c.h.b16 %v441
    %v986 = vunpack.c.l.b16 %v442
    %v987 = vunpack.c.h.b16 %v442
    %v988 = vunpack.c.l.b16 %v443
    %v989 = vunpack.c.h.b16 %v443
    %v990 = vunpack.c.l.b16 %v444
    %v991 = vunpack.c.h.b16 %v444
    %v992 = vunpack.c.l.b16 %v445
    %v993 = vunpack.c.h.b16 %v445
    %v994 = vunpack.c.l.b16 %v446
    %v995 = vunpack.c.h.b16 %v446
    %v996 = vunpack.c.l.b16 %v447
    %v997 = vunpack.c.h.b16 %v447
    %v998 = vunpack.c.l.b16 %v448
    %v999 = vunpack.c.h.b16 %v448
    %v1000 = vunpack.c.l.b16 %v449
    %v1001 = vunpack.c.h.b16 %v449
    %v1002 = vunpack.c.l.b16 %v450
    %v1003 = vunpack.c.h.b16 %v450
    %v1004 = vunpack.c.l.b16 %v451
    %v1005 = vunpack.c.h.b16 %v451
    %v1006 = vunpack.c.l.b16 %v452
    %v1007 = vunpack.c.h.b16 %v452
    %v1008 = vunpack.c.l.b16 %v453
    %v1009 = vunpack.c.h.b16 %v453
    %v1010 = vunpack.c.l.b16 %v454
    %v1011 = vunpack.c.h.b16 %v454
    %v1012 = vunpack.c.l.b16 %v455
    %v1013 = vunpack.c.h.b16 %v455
    %v1014 = vunpack.c.l.b16 %v456
    %v1015 = vunpack.c.h.b16 %v456
    %v1016 = vunpack.c.l.b16 %v457
    %v1017 = vunpack.c.h.b16 %v457
    %v1018 = vunpack.c.l.b16 %v458
    %v1019 = vunpack.c.h.b16 %v458
    %v1020 = vunpack.c.l.b16 %v459
    %v1021 = vunpack.c.h.b16 %v459
    %v1022 = vunpack.c.l.b16 %v460
    %v1023 = vunpack.c.h.b16 %v460
    %v1024 = vunpack.c.l.b16 %v461
    %v1025 = vunpack.c.h.b16 %v461
    %v1026 = vunpack.c.l.b16 %v462
    %v1027 = vunpack.c.h.b16 %v462
    %v1028 = vunpack.c.l.b16 %v463
    %v1029 = vunpack.c.h.b16 %v463
    %v1030 = vunpack.c.l.b16 %v464
    %v1031 = vunpack.c.h.b16 %v464
    %v1032 = vunpack.c.l.b16 %v465
    %v1033 = vunpack.c.h.b16 %v465
    %v1034 = vunpack.c.l.b16 %v466
    %v1035 = vunpack.c.h.b16 %v466
    %v1036 = vunpack.c.l.b16 %v467
    %v1037 = vunpack.c.h.b16 %v467
    %v1038 = vunpack.c.l.b16 %v468
    %v1039 = vunpack.c.h.b16 %v468
    %v1040 = vunpack.c.l.b16 %v469
    %v1041 = vunpack.c.h.b16 %v469
    %v1042 = vunpack.c.l.b16 %v470
    %v1043 = vunpack.c.h.b16 %v470
    %v1044 = vunpack.c.l.b16 %v471
    %v1045 = vunpack.c.h.b16 %v471
    %v1046 = vunpack.c.l.b16 %v472
    %v1047 = vunpack.c.h.b16 %v472
    %v1048 = vunpack.c.l.b16 %v473
    %v1049 = vunpack.c.h.b16 %v473
    %v1050 = vunpack.c.l.b16 %v474
    %v1051 = vunpack.c.h.b16 %v474
    %v1052 = vunpack.c.l.b16 %v475
    %v1053 = vunpack.c.h.b16 %v475
    %v1054 = vunpack.c.l.b16 %v476
    %v1055 = vunpack.c.h.b16 %v476
    %v1056 = vunpack.c.l.b16 %v477
    %v1057 = vunpack.c.h.b16 %v477
    %v1058 = vunpack.c.l.b16 %v478
    %v1059 = vunpack.c.h.b16 %v478
    %v1060 = vunpack.c.l.b16 %v479
    %v1061 = vunpack.c.h.b16 %v479
    %v1062 = vunpack.c.l.b16 %v480
    %v1063 = vunpack.c.h.b16 %v480
    %v1064 = vunpack.c.l.b16 %v481
    %v1065 = vunpack.c.h.b16 %v481
    %v1066 = vunpack.c.l.b16 %v482
    %v1067 = vunpack.c.h.b16 %v482
    %v1068 = vunpack.c.l.b16 %v483
    %v1069 = vunpack.c.h.b16 %v483
    %v1070 = vunpack.c.l.b16 %v484
    %v1071 = vunpack.c.h.b16 %v484
    %v1072 = vunpack.c.l.b16 %v485
    %v1073 = vunpack.c.h.b16 %v485
    %v1074 = vunpack.c.l.b16 %v486
    %v1075 = vunpack.c.h.b16 %v486
    %v1076 = vunpack.c.l.b16 %v487
    %v1077 = vunpack.c.h.b16 %v487
    %v1078 = vunpack.c.l.b16 %v488
    %v1079 = vunpack.c.h.b16 %v488
    %v1080 = vunpack.c.l.b16 %v489
    %v1081 = vunpack.c.h.b16 %v489
    %v1082 = vunpack.c.l.b16 %v490
    %v1083 = vunpack.c.h.b16 %v490
    %v1084 = vunpack.c.l.b16 %v491
    %v1085 = vunpack.c.h.b16 %v491
    %v1086 = vunpack.c.l.b16 %v492
    %v1087 = vunpack.c.h.b16 %v492
    %v1088 = vunpack.c.l.b16 %v493
    %v1089 = vunpack.c.h.b16 %v493
    %v1090 = vunpack.c.l.b16 %v494
    %v1091 = vunpack.c.h.b16 %v494
    %v1092 = vunpack.c.l.b16 %v495
    %v1093 = vunpack.c.h.b16 %v495
    %v1094 = vunpack.c.l.b16 %v496
    %v1095 = vunpack.c.h.b16 %v496
    %v1096 = vunpack.c.l.b16 %v497
    %v1097 = vunpack.c.h.b16 %v497
    %v1098 = vunpack.c.l.b16 %v498
    %v1099 = vunpack.c.h.b16 %v498
    %v1100 = vunpack.c.l.b16 %v499
    %v1101 = vunpack.c.h.b16 %v499
    %v1102 = vunpack.c.l.b16 %v500
    %v1103 = vunpack.c.h.b16 %v500
    %v1104 = vunpack.c.l.b16 %v501
    %v1105 = vunpack.c.h.b16 %v501
    %v1106 = vunpack.c.l.b16 %v502
    %v1107 = vunpack.c.h.b16 %v502
    %v1108 = vunpack.c.l.b16 %v503
    %v1109 = vunpack.c.h.b16 %v503
    %v1110 = vunpack.c.l.b16 %v504
    %v1111 = vunpack.c.h.b16 %v504
    %v1112 = vunpack.c.l.b16 %v505
    %v1113 = vunpack.c.h.b16 %v505
    %v1114 = vunpack.c.l.b16 %v506
    %v1115 = vunpack.c.h.b16 %v506
    %v1116 = vunpack.c.l.b16 %v507
    %v1117 = vunpack.c.h.b16 %v507
    %v1118 = vunpack.c.l.b16 %v508
    %v1119 = vunpack.c.h.b16 %v508
    %v1120 = vunpack.c.l.b16 %v509
    %v1121 = vunpack.c.h.b16 %v509
    %v1122 = vunpack.c.l.b16 %v510
    %v1123 = vunpack.c.h.b16 %v510
    %v1124 = vunpack.c.l.b16 %v511
    %v1125 = vunpack.c.h.b16 %v511
    %v1126 = vunpack.c.l.b16 %v512
    %v1127 = vunpack.c.h.b16 %v512
    %v1128 = vunpack.c.l.b16 %v513
    %v1129 = vunpack.c.h.b16 %v513
    %v1130 = vunpack.c.l.b16 %v514
    %v1131 = vunpack.c.h.b16 %v514
    %v1132 = vunpack.c.l.b16 %v515
    %v1133 = vunpack.c.h.b16 %v515
    %v1134 = vunpack.c.l.b16 %v516
    %v1135 = vunpack.c.h.b16 %v516
    %v1136 = vunpack.c.l.b16 %v517
    %v1137 = vunpack.c.h.b16 %v517
    %v1138 = vunpack.c.l.b16 %v518
    %v1139 = vunpack.c.h.b16 %v518
    %v1140 = vunpack.c.l.b16 %v519
    %v1141 = vunpack.c.h.b16 %v519
    %v1142 = vunpack.c.l.b16 %v520
    %v1143 = vunpack.c.h.b16 %v520
    %v1144 = vunpack.c.l.b16 %v521
    %v1145 = vunpack.c.h.b16 %v521
    %v1146 = vunpack.c.l.b16 %v522
    %v1147 = vunpack.c.h.b16 %v522
    %v1148 = vunpack.c.l.b16 %v523
    %v1149 = vunpack.c.h.b16 %v523
    %v1150 = vunpack.c.l.b16 %v524
    %v1151 = vunpack.c.h.b16 %v524
    %v1152 = vunpack.c.l.b16 %v525
    %v1153 = vunpack.c.h.b16 %v525
    %v1154 = vunpack.c.l.b16 %v526
    %v1155 = vunpack.c.h.b16 %v526
    %v1156 = vunpack.c.l.b16 %v527
    %v1157 = vunpack.c.h.b16 %v527
    %v1158 = vunpack.c.l.b16 %v528
    %v1159 = vunpack.c.h.b16 %v528
    %v1160 = vunpack.c.l.b16 %v529
    %v1161 = vunpack.c.h.b16 %v529
    %v1162 = vunpack.c.l.b16 %v530
    %v1163 = vunpack.c.h.b16 %v530
    %v1164 = vunpack.c.l.b16 %v531
    %v1165 = vunpack.c.h.b16 %v531
    %v1166 = vunpack.c.l.b16 %v532
    %v1167 = vunpack.c.h.b16 %v532
    %v1168 = vunpack.c.l.b16 %v533
    %v1169 = vunpack.c.h.b16 %v533
    %v1170 = vunpack.c.l.b16 %v534
    %v1171 = vunpack.c.h.b16 %v534
    %v1172 = vunpack.c.l.b16 %v535
    %v1173 = vunpack.c.h.b16 %v535
    %v1174 = vunpack.c.l.b16 %v536
    %v1175 = vunpack.c.h.b16 %v536
    %v1176 = vunpack.c.l.b16 %v537
    %v1177 = vunpack.c.h.b16 %v537
    %v1178 = vunpack.c.l.b16 %v538
    %v1179 = vunpack.c.h.b16 %v538
    %v1180 = vunpack.c.l.b16 %v539
    %v1181 = vunpack.c.h.b16 %v539
    %v1182 = vunpack.c.l.b16 %v540
    %v1183 = vunpack.c.h.b16 %v540
    %v1184 = vunpack.c.l.b16 %v541
    %v1185 = vunpack.c.h.b16 %v541
    %v1186 = vunpack.c.l.b16 %v542
    %v1187 = vunpack.c.h.b16 %v542
    %v1188 = vunpack.c.l.b16 %v543
    %v1189 = vunpack.c.h.b16 %v543
    %v1190 = vunpack.c.l.b16 %v544
    %v1191 = vunpack.c.h.b16 %v544
    %v1192 = vunpack.c.l.b16 %v545
    %v1193 = vunpack.c.h.b16 %v545
    %v1194 = vunpack.c.l.b16 %v546
    %v1195 = vunpack.c.h.b16 %v546
    %v1196 = vunpack.c.l.b16 %v547
    %v1197 = vunpack.c.h.b16 %v547
    %v1198 = vunpack.c.l.b16 %v548
    %v1199 = vunpack.c.h.b16 %v548
    %v1200 = vunpack.c.l.b16 %v549
    %v1201 = vunpack.c.h.b16 %v549
    %v1202 = vunpack.c.l.b16 %v550
    %v1203 = vunpack.c.h.b16 %v550
    %v1204 = vunpack.c.l.b16 %v551
    %v1205 = vunpack.c.h.b16 %v551
    %v1206 = vunpack.c.l.b16 %v552
    %v1207 = vunpack.c.h.b16 %v552
    %v1208 = vunpack.c.l.b16 %v553
    %v1209 = vunpack.c.h.b16 %v553
    %v1210 = vunpack.c.l.b16 %v554
    %v1211 = vunpack.c.h.b16 %v554
    %v1212 = vunpack.c.l.b16 %v555
    %v1213 = vunpack.c.h.b16 %v555
    %v1214 = vunpack.c.l.b16 %v556
    %v1215 = vunpack.c.h.b16 %v556
    %v1216 = vunpack.c.l.b16 %v557
    %v1217 = vunpack.c.h.b16 %v557
    %v1218 = vunpack.c.l.b16 %v558
    %v1219 = vunpack.c.h.b16 %v558
    %v1220 = vunpack.c.l.b16 %v559
    %v1221 = vunpack.c.h.b16 %v559
    %v1222 = vunpack.c.l.b16 %v560
    %v1223 = vunpack.c.h.b16 %v560
    %v1224 = vunpack.c.l.b16 %v561
    %v1225 = vunpack.c.h.b16 %v561
    %v1226 = vunpack.c.l.b16 %v562
    %v1227 = vunpack.c.h.b16 %v562
    %v1228 = vunpack.c.l.b16 %v563
    %v1229 = vunpack.c.h.b16 %v563
    %v1230 = vunpack.c.l.b16 %v564
    %v1231 = vunpack.c.h.b16 %v564
    %v1232 = vunpack.c.l.b16 %v565
    %v1233 = vunpack.c.h.b16 %v565
    %v1234 = vunpack.c.l.b16 %v566
    %v1235 = vunpack.c.h.b16 %v566
    %v1236 = vunpack.c.l.b16 %v567
    %v1237 = vunpack.c.h.b16 %v567
    %v1238 = vunpack.c.l.b16 %v568
    %v1239 = vunpack.c.h.b16 %v568
    %v1240 = vunpack.c.l.b16 %v569
    %v1241 = vunpack.c.h.b16 %v569
    %v1242 = vunpack.c.l.b16 %v570
    %v1243 = vunpack.c.h.b16 %v570
    %v1244 = vunpack.c.l.b16 %v571
    %v1245 = vunpack.c.h.b16 %v571
    %v1246 = vunpack.c.l.b16 %v572
    %v1247 = vunpack.c.h.b16 %v572
    %v1248 = vunpack.c.l.b16 %v573
    %v1249 = vunpack.c.h.b16 %v573
    %v1250 = vunpack.c.l.b16 %v574
    %v1251 = vunpack.c.h.b16 %v574
    %v1252 = vunpack.c.l.b16 %v575
    %v1253 = vunpack.c.h.b16 %v575
    %v1254 = vunpack.c.l.b16 %v576
    %v1255 = vunpack.c.h.b16 %v576
    %v1256 = vunpack.c.l.b16 %v577
    %v1257 = vunpack.c.h.b16 %v577
    %v1258 = vunpack.c.l.b16 %v578
    %v1259 = vunpack.c.h.b16 %v578
    %v1260 = vunpack.c.l.b16 %v579
    %v1261 = vunpack.c.h.b16 %v579
    %v1262 = vunpack.c.l.b16 %v580
    %v1263 = vunpack.c.h.b16 %v580
    %v1264 = vunpack.c.l.b16 %v581
    %v1265 = vunpack.c.h.b16 %v581
    %v1266 = vunpack.c.l.b16 %v582
    %v1267 = vunpack.c.h.b16 %v582
    %v1268 = vunpack.c.l.b16 %v583
    %v1269 = vunpack.c.h.b16 %v583
    %v1270 = vunpack.c.l.b16 %v584
    %v1271 = vunpack.c.h.b16 %v584
    %v1272 = vunpack.c.l.b16 %v585
    %v1273 = vunpack.c.h.b16 %v585
    %v1274 = vunpack.c.l.b16 %v586
    %v1275 = vunpack.c.h.b16 %v586
    %v1276 = vunpack.c.l.b16 %v587
    %v1277 = vunpack.c.h.b16 %v587
    %v1278 = vunpack.c.l.b16 %v588
    %v1279 = vunpack.c.h.b16 %v588
    %v1280 = vunpack.c.l.b16 %v589
    %v1281 = vunpack.c.h.b16 %v589
    %v1282 = vunpack.c.l.b16 %v590
    %v1283 = vunpack.c.h.b16 %v590
    %v1284 = vunpack.c.l.b16 %v591
    %v1285 = vunpack.c.h.b16 %v591
    %v1286 = vunpack.c.l.b16 %v592
    %v1287 = vunpack.c.h.b16 %v592
    %v1288 = vunpack.c.l.b16 %v593
    %v1289 = vunpack.c.h.b16 %v593
    %v1290 = vunpack.c.l.b16 %v594
    %v1291 = vunpack.c.h.b16 %v594
    %v1292 = vunpack.c.l.b16 %v595
    %v1293 = vunpack.c.h.b16 %v595
    %v1294 = vunpack.c.l.b16 %v596
    %v1295 = vunpack.c.h.b16 %v596
    %v1296 = vunpack.c.l.b16 %v597
    %v1297 = vunpack.c.h.b16 %v597
    %v1298 = vunpack.c.l.b16 %v598
    %v1299 = vunpack.c.h.b16 %v598
    %v1300 = vunpack.c.l.b16 %v599
    %v1301 = vunpack.c.h.b16 %v599
    %v1302 = vunpack.c.l.b16 %v600
    %v1303 = vunpack.c.h.b16 %v600
    %v1304 = vunpack.c.l.b16 %v601
    %v1305 = vunpack.c.h.b16 %v601
    %v1306 = vunpack.c.l.b16 %v602
    %v1307 = vunpack.c.h.b16 %v602
    %v1308 = vunpack.c.l.b16 %v603
    %v1309 = vunpack.c.h.b16 %v603
    %v1310 = vunpack.c.l.b16 %v604
    %v1311 = vunpack.c.h.b16 %v604
    %v1312 = vunpack.c.l.b16 %v605
    %v1313 = vunpack.c.h.b16 %v605
    %v1314 = vunpack.c.l.b16 %v606
    %v1315 = vunpack.c.h.b16 %v606
    %v1316 = vunpack.c.l.b16 %v607
    %v1317 = vunpack.c.h.b16 %v607
    %v1318 = vunpack.c.l.b16 %v608
    %v1319 = vunpack.c.h.b16 %v608
    %v1320 = vunpack.c.l.b16 %v609
    %v1321 = vunpack.c.h.b16 %v609
    %v1322 = vunpack.c.l.b16 %v610
    %v1323 = vunpack.c.h.b16 %v610
    %v1324 = vunpack.c.l.b16 %v611
    %v1325 = vunpack.c.h.b16 %v611
    %v1326 = vunpack.c.l.b16 %v612
    %v1327 = vunpack.c.h.b16 %v612
    %v1328 = vunpack.c.l.b16 %v613
    %v1329 = vunpack.c.h.b16 %v613
    %v1330 = vunpack.c.l.b16 %v614
    %v1331 = vunpack.c.h.b16 %v614
    %v1332 = vunpack.c.l.b16 %v615
    %v1333 = vunpack.c.h.b16 %v615
    %v1334 = vunpack.c.l.b16 %v616
    %v1335 = vunpack.c.h.b16 %v616
    %v1336 = vunpack.c.l.b16 %v617
    %v1337 = vunpack.c.h.b16 %v617
    %v1338 = vunpack.c.l.b16 %v618
    %v1339 = vunpack.c.h.b16 %v618
    %v1340 = vunpack.c.l.b16 %v619
    %v1341 = vunpack.c.h.b16 %v619
    %v1342 = vunpack.c.l.b16 %v620
    %v1343 = vunpack.c.h.b16 %v620
    %v1344 = vunpack.c.l.b16 %v621
    %v1345 = vunpack.c.h.b16 %v621
    %v1346 = vunpack.c.l.b16 %v622
    %v1347 = vunpack.c.h.b16 %v622
    %v1348 = vunpack.c.l.b16 %v623
    %v1349 = vunpack.c.h.b16 %v623
    %v1350 = vunpack.c.l.b16 %v624
    %v1351 = vunpack.c.h.b16 %v624
    %v1352 = vunpack.c.l.b16 %v625
    %v1353 = vunpack.c.h.b16 %v625
    %v1354 = vunpack.c.l.b16 %v626
    %v1355 = vunpack.c.h.b16 %v626
    %v1356 = vunpack.c.l.b16 %v627
    %v1357 = vunpack.c.h.b16 %v627
    %v1358 = vunpack.c.l.b16 %v628
    %v1359 = vunpack.c.h.b16 %v628
    %v1360 = vunpack.c.l.b16 %v629
    %v1361 = vunpack.c.h.b16 %v629
    %v1362 = vunpack.c.l.b16 %v630
    %v1363 = vunpack.c.h.b16 %v630
    %v1364 = vunpack.c.l.b16 %v631
    %v1365 = vunpack.c.h.b16 %v631
    %v1366 = vunpack.c.l.b16 %v632
    %v1367 = vunpack.c.h.b16 %v632
    %v1368 = vunpack.c.l.b16 %v633
    %v1369 = vunpack.c.h.b16 %v633
    %v1370 = vunpack.c.l.b16 %v634
    %v1371 = vunpack.c.h.b16 %v634
    %v1372 = vunpack.c.l.b16 %v635
    %v1373 = vunpack.c.h.b16 %v635
    %v1374 = vunpack.c.l.b16 %v636
    %v1375 = vunpack.c.h.b16 %v636
    %v1376 = vunpack.c.l.b16 %v637
    %v1377 = vunpack.c.h.b16 %v637
    %v1378 = vunpack.c.l.b16 %v638
    %v1379 = vunpack.c.h.b16 %v638
    %v1380 = vunpack.c.l.b16 %v639
    %v1381 = vunpack.c.h.b16 %v639
    %v1382 = vunpack.c.l.b16 %v640
    %v1383 = vunpack.c.h.b16 %v640
    %v1384 = vunpack.c.l.b16 %v641
    %v1385 = vunpack.c.h.b16 %v641
    %v1386 = vunpack.c.l.b16 %v642
    %v1387 = vunpack.c.h.b16 %v642
    %v1388 = vunpack.c.l.b16 %v643
    %v1389 = vunpack.c.h.b16 %v643
    %v1390 = vunpack.c.l.b16 %v644
    %v1391 = vunpack.c.h.b16 %v644
    %v1392 = vunpack.c.l.b16 %v645
    %v1393 = vunpack.c.h.b16 %v645
    %v1394 = vunpack.c.l.b16 %v646
    %v1395 = vunpack.c.h.b16 %v646
    %v1396 = vunpack.c.l.b16 %v647
    %v1397 = vunpack.c.h.b16 %v647
    %v1398 = vunpack.c.l.b16 %v648
    %v1399 = vunpack.c.h.b16 %v648
    %v1400 = vunpack.c.l.b16 %v649
    %v1401 = vunpack.c.h.b16 %v649
    %v1402 = vunpack.c.l.b16 %v650
    %v1403 = vunpack.c.h.b16 %v650
    %v1404 = vunpack.c.l.b16 %v651
    %v1405 = vunpack.c.h.b16 %v651
    %v1406 = vunpack.c.l.b16 %v652
    %v1407 = vunpack.c.h.b16 %v652
    %v1408 = vunpack.c.l.b16 %v653
    %v1409 = vunpack.c.h.b16 %v653
    %v1410 = vunpack.c.l.b16 %v654
    %v1411 = vunpack.c.h.b16 %v654
    %v1412 = vunpack.c.l.b16 %v655
    %v1413 = vunpack.c.h.b16 %v655
    %v1414 = vunpack.c.l.b16 %v656
    %v1415 = vunpack.c.h.b16 %v656
    %v1416 = vunpack.c.l.b16 %v657
    %v1417 = vunpack.c.h.b16 %v657
    %v1418 = vunpack.c.l.b16 %v658
    %v1419 = vunpack.c.h.b16 %v658
    %v1420 = vunpack.c.l.b16 %v659
    %v1421 = vunpack.c.h.b16 %v659
    %v1422 = vunpack.c.l.b16 %v660
    %v1423 = vunpack.c.h.b16 %v660
    %v1424 = vunpack.c.l.b16 %v661
    %v1425 = vunpack.c.h.b16 %v661
    %v1426 = vunpack.c.l.b16 %v662
    %v1427 = vunpack.c.h.b16 %v662
    %v1428 = vunpack.c.l.b16 %v663
    %v1429 = vunpack.c.h.b16 %v663
    %v1430 = vunpack.c.l.b16 %v664
    %v1431 = vunpack.c.h.b16 %v664
    %v1432 = vunpack.c.l.b16 %v665
    %v1433 = vunpack.c.h.b16 %v665
    %v1434 = vpack.c.b16 %v930, %v922
    %v1435 = vpack.c.b16 %v931, %v923
    %v1436 = vpack.c.b16 %v932, %v924
    %v1437 = vpack.c.b16 %v933, %v925
    %v1438 = vpack.c.b16 %v934, %v926
    %v1439 = vpack.c.b16 %v935, %v927
    %v1440 = vpack.c.b16 %v936, %v928
    %v1441 = vpack.c.b16 %v937, %v929
    %v1442 = vpack.c.b16 %v946, %v938
    %v1443 = vpack.c.b16 %v947, %v939
    %v1444 = vpack.c.b16 %v948, %v940
    %v1445 = vpack.c.b16 %v949, %v941
    %v1446 = vpack.c.b16 %v950, %v942
    %v1447 = vpack.c.b16 %v951, %v943
    %v1448 = vpack.c.b16 %v952, %v944
    %v1449 = vpack.c.b16 %v953, %v945
    %v1450 = vpack.c.b16 %v962, %v954
    %v1451 = vpack.c.b16 %v963, %v955
    %v1452 = vpack.c.b16 %v964, %v956
    %v1453 = vpack.c.b16 %v965, %v957
    %v1454 = vpack.c.b16 %v966, %v958
    %v1455 = vpack.c.b16 %v967, %v959
    %v1456 = vpack.c.b16 %v968, %v960
    %v1457 = vpack.c.b16 %v969, %v961
    %v1458 = vpack.c.b16 %v978, %v970
    %v1459 = vpack.c.b16 %v979, %v971
    %v1460 = vpack.c.b16 %v980, %v972
    %v1461 = vpack.c.b16 %v981, %v973
    %v1462 = vpack.c.b16 %v982, %v974
    %v1463 = vpack.c.b16 %v983, %v975
    %v1464 = vpack.c.b16 %v984, %v976
    %v1465 = vpack.c.b16 %v985, %v977
    %v1466 = vpack.c.b16 %v994, %v986
    %v1467 = vpack.c.b16 %v995, %v987
    %v1468 = vpack.c.b16 %v996, %v988
    %v1469 = vpack.c.b16 %v997, %v989
    %v1470 = vpack.c.b16 %v998, %v990
    %v1471 = vpack.c.b16 %v999, %v991
    %v1472 = vpack.c.b16 %v1000, %v992
    %v1473 = vpack.c.b16 %v1001, %v993
    %v1474 = vpack.c.b16 %v1010, %v1002
    %v1475 = vpack.c.b16 %v1011, %v1003
    %v1476 = vpack.c.b16 %v1012, %v1004
    %v1477 = vpack.c.b16 %v1013, %v1005
    %v1478 = vpack.c.b16 %v1014, %v1006
    %v1479 = vpack.c.b16 %v1015, %v1007
    %v1480 = vpack.c.b16 %v1016, %v1008
    %v1481 = vpack.c.b16 %v1017, %v1009
    %v1482 = vpack.c.b16 %v1026, %v1018
    %v1483 = vpack.c.b16 %v1027, %v1019
    %v1484 = vpack.c.b16 %v1028, %v1020
    %v1485 = vpack.c.b16 %v1029, %v1021
    %v1486 = vpack.c.b16 %v1030, %v1022
    %v1487 = vpack.c.b16 %v1031, %v1023
    %v1488 = vpack.c.b16 %v1032, %v1024
    %v1489 = vpack.c.b16 %v1033, %v1025
    %v1490 = vpack.c.b16 %v1042, %v1034
    %v1491 = vpack.c.b16 %v1043, %v1035
    %v1492 = vpack.c.b16 %v1044, %v1036
    %v1493 = vpack.c.b16 %v1045, %v1037
    %v1494 = vpack.c.b16 %v1046, %v1038
    %v1495 = vpack.c.b16 %v1047, %v1039
    %v1496 = vpack.c.b16 %v1048, %v1040
    %v1497 = vpack.c.b16 %v1049, %v1041
    %v1498 = vpack.c.b16 %v1058, %v1050
    %v1499 = vpack.c.b16 %v1059, %v1051
    %v1500 = vpack.c.b16 %v1060, %v1052
    %v1501 = vpack.c.b16 %v1061, %v1053
    %v1502 = vpack.c.b16 %v1062, %v1054
    %v1503 = vpack.c.b16 %v1063, %v1055
    %v1504 = vpack.c.b16 %v1064, %v1056
    %v1505 = vpack.c.b16 %v1065, %v1057
    %v1506 = vpack.c.b16 %v1074, %v1066
    %v1507 = vpack.c.b16 %v1075, %v1067
    %v1508 = vpack.c.b16 %v1076, %v1068
    %v1509 = vpack.c.b16 %v1077, %v1069
    %v1510 = vpack.c.b16 %v1078, %v1070
    %v1511 = vpack.c.b16 %v1079, %v1071
    %v1512 = vpack.c.b16 %v1080, %v1072
    %v1513 = vpack.c.b16 %v1081, %v1073
    %v1514 = vpack.c.b16 %v1090, %v1082
    %v1515 = vpack.c.b16 %v1091, %v1083
    %v1516 = vpack.c.b16 %v1092, %v1084
    %v1517 = vpack.c.b16 %v1093, %v1085
    %v1518 = vpack.c.b16 %v1094, %v1086
    %v1519 = vpack.c.b16 %v1095, %v1087
    %v1520 = vpack.c.b16 %v1096, %v1088
    %v1521 = vpack.c.b16 %v1097, %v1089
    %v1522 = vpack.c.b16 %v1106, %v1098
    %v1523 = vpack.c.b16 %v1107, %v1099
    %v1524 = vpack.c.b16 %v1108, %v1100
    %v1525 = vpack.c.b16 %v1109, %v1101
    %v1526 = vpack.c.b16 %v1110, %v1102
    %v1527 = vpack.c.b16 %v1111, %v1103
    %v1528 = vpack.c.b16 %v1112, %v1104
    %v1529 = vpack.c.b16 %v1113, %v1105
    %v1530 = vpack.c.b16 %v1122, %v1114
    %v1531 = vpack.c.b16 %v1123, %v1115
    %v1532 = vpack.c.b16 %v1124, %v1116
    %v1533 = vpack.c.b16 %v1125, %v1117
    %v1534 = vpack.c.b16 %v1126, %v1118
    %v1535 = vpack.c.b16 %v1127, %v1119
    %v1536 = vpack.c.b16 %v1128, %v1120
    %v1537 = vpack.c.b16 %v1129, %v1121
    %v1538 = vpack.c.b16 %v1138, %v1130
    %v1539 = vpack.c.b16 %v1139, %v1131
    %v1540 = vpack.c.b16 %v1140, %v1132
    %v1541 = vpack.c.b16 %v1141, %v1133
    %v1542 = vpack.c.b16 %v1142, %v1134
    %v1543 = vpack.c.b16 %v1143, %v1135
    %v1544 = vpack.c.b16 %v1144, %v1136
    %v1545 = vpack.c.b16 %v1145, %v1137
    %v1546 = vpack.c.b16 %v1154, %v1146
    %v1547 = vpack.c.b16 %v1155, %v1147
    %v1548 = vpack.c.b16 %v1156, %v1148
    %v1549 = vpack.c.b16 %v1157, %v1149
    %v1550 = vpack.c.b16 %v1158, %v1150
    %v1551 = vpack.c.b16 %v1159, %v1151
    %v1552 = vpack.c.b16 %v1160, %v1152
    %v1553 = vpack.c.b16 %v1161, %v1153
    %v1554 = vpack.c.b16 %v1170, %v1162
    %v1555 = vpack.c.b16 %v1171, %v1163
    %v1556 = vpack.c.b16 %v1172, %v1164
    %v1557 = vpack.c.b16 %v1173, %v1165
    %v1558 = vpack.c.b16 %v1174, %v1166
    %v1559 = vpack.c.b16 %v1175, %v1167
    %v1560 = vpack.c.b16 %v1176, %v1168
    %v1561 = vpack.c.b16 %v1177, %v1169
    %v1562 = vpack.c.b16 %v1186, %v1178
    %v1563 = vpack.c.b16 %v1187, %v1179
    %v1564 = vpack.c.b16 %v1188, %v1180
    %v1565 = vpack.c.b16 %v1189, %v1181
    %v1566 = vpack.c.b16 %v1190, %v1182
    %v1567 = vpack.c.b16 %v1191, %v1183
    %v1568 = vpack.c.b16 %v1192, %v1184
    %v1569 = vpack.c.b16 %v1193, %v1185
    %v1570 = vpack.c.b16 %v1202, %v1194
    %v1571 = vpack.c.b16 %v1203, %v1195
    %v1572 = vpack.c.b16 %v1204, %v1196
    %v1573 = vpack.c.b16 %v1205, %v1197
    %v1574 = vpack.c.b16 %v1206, %v1198
    %v1575 = vpack.c.b16 %v1207, %v1199
    %v1576 = vpack.c.b16 %v1208, %v1200
    %v1577 = vpack.c.b16 %v1209, %v1201
    %v1578 = vpack.c.b16 %v1218, %v1210
    %v1579 = vpack.c.b16 %v1219, %v1211
    %v1580 = vpack.c.b16 %v1220, %v1212
    %v1581 = vpack.c.b16 %v1221, %v1213
    %v1582 = vpack.c.b16 %v1222, %v1214
    %v1583 = vpack.c.b16 %v1223, %v1215
    %v1584 = vpack.c.b16 %v1224, %v1216
    %v1585 = vpack.c.b16 %v1225, %v1217
    %v1586 = vpack.c.b16 %v1234, %v1226
    %v1587 = vpack.c.b16 %v1235, %v1227
    %v1588 = vpack.c.b16 %v1236, %v1228
    %v1589 = vpack.c.b16 %v1237, %v1229
    %v1590 = vpack.c.b16 %v1238, %v1230
    %v1591 = vpack.c.b16 %v1239, %v1231
    %v1592 = vpack.c.b16 %v1240, %v1232
    %v1593 = vpack.c.b16 %v1241, %v1233
    %v1594 = vpack.c.b16 %v1250, %v1242
    %v1595 = vpack.c.b16 %v1251, %v1243
    %v1596 = vpack.c.b16 %v1252, %v1244
    %v1597 = vpack.c.b16 %v1253, %v1245
    %v1598 = vpack.c.b16 %v1254, %v1246
    %v1599 = vpack.c.b16 %v1255, %v1247
    %v1600 = vpack.c.b16 %v1256, %v1248
    %v1601 = vpack.c.b16 %v1257, %v1249
    %v1602 = vpack.c.b16 %v1266, %v1258
    %v1603 = vpack.c.b16 %v1267, %v1259
    %v1604 = vpack.c.b16 %v1268, %v1260
    %v1605 = vpack.c.b16 %v1269, %v1261
    %v1606 = vpack.c.b16 %v1270, %v1262
    %v1607 = vpack.c.b16 %v1271, %v1263
    %v1608 = vpack.c.b16 %v1272, %v1264
    %v1609 = vpack.c.b16 %v1273, %v1265
    %v1610 = vpack.c.b16 %v1282, %v1274
    %v1611 = vpack.c.b16 %v1283, %v1275
    %v1612 = vpack.c.b16 %v1284, %v1276
    %v1613 = vpack.c.b16 %v1285, %v1277
    %v1614 = vpack.c.b16 %v1286, %v1278
    %v1615 = vpack.c.b16 %v1287, %v1279
    %v1616 = vpack.c.b16 %v1288, %v1280
    %v1617 = vpack.c.b16 %v1289, %v1281
    %v1618 = vpack.c.b16 %v1298, %v1290
    %v1619 = vpack.c.b16 %v1299, %v1291
    %v1620 = vpack.c.b16 %v1300, %v1292
    %v1621 = vpack.c.b16 %v1301, %v1293
    %v1622 = vpack.c.b16 %v1302, %v1294
    %v1623 = vpack.c.b16 %v1303, %v1295
    %v1624 = vpack.c.b16 %v1304, %v1296
    %v1625 = vpack.c.b16 %v1305, %v1297
    %v1626 = vpack.c.b16 %v1314, %v1306
    %v1627 = vpack.c.b16 %v1315, %v1307
    %v1628 = vpack.c.b16 %v1316, %v1308
    %v1629 = vpack.c.b16 %v1317, %v1309
    %v1630 = vpack.c.b16 %v1318, %v1310
    %v1631 = vpack.c.b16 %v1319, %v1311
    %v1632 = vpack.c.b16 %v1320, %v1312
    %v1633 = vpack.c.b16 %v1321, %v1313
    %v1634 = vpack.c.b16 %v1330, %v1322
    %v1635 = vpack.c.b16 %v1331, %v1323
    %v1636 = vpack.c.b16 %v1332, %v1324
    %v1637 = vpack.c.b16 %v1333, %v1325
    %v1638 = vpack.c.b16 %v1334, %v1326
    %v1639 = vpack.c.b16 %v1335, %v1327
    %v1640 = vpack.c.b16 %v1336, %v1328
    %v1641 = vpack.c.b16 %v1337, %v1329
    %v1642 = vpack.c.b16 %v1346, %v1338
    %v1643 = vpack.c.b16 %v1347, %v1339
    %v1644 = vpack.c.b16 %v1348, %v1340
    %v1645 = vpack.c.b16 %v1349, %v1341
    %v1646 = vpack.c.b16 %v1350, %v1342
    %v1647 = vpack.c.b16 %v1351, %v1343
    %v1648 = vpack.c.b16 %v1352, %v1344
    %v1649 = vpack.c.b16 %v1353, %v1345
    %v1650 = vpack.c.b16 %v1362, %v1354
    %v1651 = vpack.c.b16 %v1363, %v1355
    %v1652 = vpack.c.b16 %v1364, %v1356
    %v1653 = vpack.c.b16 %v1365, %v1357
    %v1654 = vpack.c.b16 %v1366, %v1358
    %v1655 = vpack.c.b16 %v1367, %v1359
    %v1656 = vpack.c.b16 %v1368, %v1360
    %v1657 = vpack.c.b16 %v1369, %v1361
    %v1658 = vpack.c.b16 %v1378, %v1370
    %v1659 = vpack.c.b16 %v1379, %v1371
    %v1660 = vpack.c.b16 %v1380, %v1372
    %v1661 = vpack.c.b16 %v1381, %v1373
    %v1662 = vpack.c.b16 %v1382, %v1374
    %v1663 = vpack.c.b16 %v1383, %v1375
    %v1664 = vpack.c.b16 %v1384, %v1376
    %v1665 = vpack.c.b16 %v1385, %v1377
    %v1666 = vpack.c.b16 %v1394, %v1386
    %v1667 = vpack.c.b16 %v1395, %v1387
    %v1668 = vpack.c.b16 %v1396, %v1388
    %v1669 = vpack.c.b16 %v1397, %v1389
    %v1670 = vpack.c.b16 %v1398, %v1390
    %v1671 = vpack.c.b16 %v1399, %v1391
    %v1672 = vpack.c.b16 %v1400, %v1392
    %v1673 = vpack.c.b16 %v1401, %v1393
    %v1674 = vpack.c.b16 %v1410, %v1402
    %v1675 = vpack.c.b16 %v1411, %v1403
    %v1676 = vpack.c.b16 %v1412, %v1404
    %v1677 = vpack.c.b16 %v1413, %v1405
    %v1678 = vpack.c.b16 %v1414, %v1406
    %v1679 = vpack.c.b16 %v1415, %v1407
    %v1680 = vpack.c.b16 %v1416, %v1408
    %v1681 = vpack.c.b16 %v1417, %v1409
    %v1682 = vpack.c.b16 %v1426, %v1418
    %v1683 = vpack.c.b16 %v1427, %v1419
    %v1684 = vpack.c.b16 %v1428, %v1420
    %v1685 = vpack.c.b16 %v1429, %v1421
    %v1686 = vpack.c.b16 %v1430, %v1422
    %v1687 = vpack.c.b16 %v1431, %v1423
    %v1688 = vpack.c.b16 %v1432, %v1424
    %v1689 = vpack.c.b16 %v1433, %v1425
    %1946 = vmatprep.subr.bf16.mxu0 %v1435
    %1947 = vmatpush1.bf16.msra.mxu0 %v1434
    %1948 = vmatprep.subr.bf16.mxu0 %v1443
    %1949 = vmatpush1.bf16.msra.mxu0 %v1442
    %1950 = vmatprep.subr.bf16.mxu0 %v1451
    %1951 = vmatpush1.bf16.msra.mxu0 %v1450
    %1952 = vmatprep.subr.bf16.mxu0 %v1459
    %1953 = vmatpush1.bf16.msra.mxu0 %v1458
    %1954 = vmatprep.subr.bf16.mxu0 %v1467
    %1955 = vmatpush1.bf16.msra.mxu0 %v1466
    %1956 = vmatprep.subr.bf16.mxu0 %v1475
    %1957 = vmatpush1.bf16.msra.mxu0 %v1474
    %1958 = vmatprep.subr.bf16.mxu0 %v1483
    %1959 = vmatpush1.bf16.msra.mxu0 %v1482
    %1960 = vmatprep.subr.bf16.mxu0 %v1491
    %1961 = vmatpush1.bf16.msra.mxu0 %v1490
    %1962 = vmatprep.subr.bf16.mxu0 %v1499
    %1963 = vmatpush1.bf16.msra.mxu0 %v1498
    %1964 = vmatprep.subr.bf16.mxu0 %v1507
    %1965 = vmatpush1.bf16.msra.mxu0 %v1506
    %1966 = vmatprep.subr.bf16.mxu0 %v1515
    %1967 = vmatpush1.bf16.msra.mxu0 %v1514
    %1968 = vmatprep.subr.bf16.mxu0 %v1523
    %1969 = vmatpush1.bf16.msra.mxu0 %v1522
    %1970 = vmatprep.subr.bf16.mxu0 %v1531
    %1971 = vmatpush1.bf16.msra.mxu0 %v1530
    %1972 = vmatprep.subr.bf16.mxu0 %v1539
    %1973 = vmatpush1.bf16.msra.mxu0 %v1538
    %1974 = vmatprep.subr.bf16.mxu0 %v1547
    %1975 = vmatpush1.bf16.msra.mxu0 %v1546
    %1976 = vmatprep.subr.bf16.mxu0 %v1555
    %1977 = vmatpush1.bf16.msra.mxu0 %v1554
    %1978 = vmatprep.mubr.bf16.mxu0 %v407
    %1979 = vmatmul.mubr.bf16.gmra.mrb[0].mxu0 %v406
    %v1980 = vpop.f32.mrb[0].mxu0
    %v1981 = vadd.f32 0.0, %v1980
    %v1982 = vpop.f32.mrb[0].mxu0
    %v1983 = vadd.f32 0.0, %v1982
    %v1984 = vpop.f32.mrb[0].mxu0
    %v1985 = vpop.f32.mrb[0].mxu0
    %1986 = vdwg.mxu0
    %1987 = vmatprep.subr.bf16.mxu0 %v1563
    %1988 = vmatpush1.bf16.msra.mxu0 %v1562
    %1989 = vmatprep.subr.bf16.mxu0 %v1571
    %1990 = vmatpush1.bf16.msra.mxu0 %v1570
    %1991 = vmatprep.subr.bf16.mxu0 %v1579
    %1992 = vmatpush1.bf16.msra.mxu0 %v1578
    %1993 = vmatprep.subr.bf16.mxu0 %v1587
    %1994 = vmatpush1.bf16.msra.mxu0 %v1586
    %1995 = vmatprep.subr.bf16.mxu0 %v1595
    %1996 = vmatpush1.bf16.msra.mxu0 %v1594
    %1997 = vmatprep.subr.bf16.mxu0 %v1603
    %1998 = vmatpush1.bf16.msra.mxu0 %v1602
    %1999 = vmatprep.subr.bf16.mxu0 %v1611
    %2000 = vmatpush1.bf16.msra.mxu0 %v1610
    %2001 = vmatprep.subr.bf16.mxu0 %v1619
    %2002 = vmatpush1.bf16.msra.mxu0 %v1618
    %2003 = vmatprep.subr.bf16.mxu0 %v1627
    %2004 = vmatpush1.bf16.msra.mxu0 %v1626
    %2005 = vmatprep.subr.bf16.mxu0 %v1635
    %2006 = vmatpush1.bf16.msra.mxu0 %v1634
    %2007 = vmatprep.subr.bf16.mxu0 %v1643
    %2008 = vmatpush1.bf16.msra.mxu0 %v1642
    %2009 = vmatprep.subr.bf16.mxu0 %v1651
    %2010 = vmatpush1.bf16.msra.mxu0 %v1650
    %2011 = vmatprep.subr.bf16.mxu0 %v1659
    %2012 = vmatpush1.bf16.msra.mxu0 %v1658
    %2013 = vmatprep.subr.bf16.mxu0 %v1667
    %2014 = vmatpush1.bf16.msra.mxu0 %v1666
    %2015 = vmatprep.subr.bf16.mxu0 %v1675
    %2016 = vmatpush1.bf16.msra.mxu0 %v1674
    %2017 = vmatprep.subr.bf16.mxu0 %v1683
    %2018 = vmatpush1.bf16.msra.mxu0 %v1682
    %2019 = vmatprep.mubr.bf16.mxu0 %v409
    %2020 = vmatmul.mubr.bf16.gmra.mrb[0].mxu0 %v408
    %v2021 = vpop.f32.mrb[0].mxu0
    %v2022 = vadd.f32 %v1981, %v2021
    %v2023 = vpop.f32.mrb[0].mxu0
    %v2024 = vadd.f32 %v1983, %v2023
    %v2025 = vpop.f32.mrb[0].mxu0
    %v2026 = vpop.f32.mrb[0].mxu0
    %2027 = vdwg.mxu0
    %2028 = vmatprep.subr.bf16.mxu0 %v1437
    %2029 = vmatpush1.bf16.msra.mxu0 %v1436
    %2030 = vmatprep.subr.bf16.mxu0 %v1445
    %2031 = vmatpush1.bf16.msra.mxu0 %v1444
    %2032 = vmatprep.subr.bf16.mxu0 %v1453
    %2033 = vmatpush1.bf16.msra.mxu0 %v1452
    %2034 = vmatprep.subr.bf16.mxu0 %v1461
    %2035 = vmatpush1.bf16.msra.mxu0 %v1460
    %2036 = vmatprep.subr.bf16.mxu0 %v1469
    %2037 = vmatpush1.bf16.msra.mxu0 %v1468
    %2038 = vmatprep.subr.bf16.mxu0 %v1477
    %2039 = vmatpush1.bf16.msra.mxu0 %v1476
    %2040 = vmatprep.subr.bf16.mxu0 %v1485
    %2041 = vmatpush1.bf16.msra.mxu0 %v1484
    %2042 = vmatprep.subr.bf16.mxu0 %v1493
    %2043 = vmatpush1.bf16.msra.mxu0 %v1492
    %2044 = vmatprep.subr.bf16.mxu0 %v1501
    %2045 = vmatpush1.bf16.msra.mxu0 %v1500
    %2046 = vmatprep.subr.bf16.mxu0 %v1509
    %2047 = vmatpush1.bf16.msra.mxu0 %v1508
    %2048 = vmatprep.subr.bf16.mxu0 %v1517
    %2049 = vmatpush1.bf16.msra.mxu0 %v1516
    %2050 = vmatprep.subr.bf16.mxu0 %v1525
    %2051 = vmatpush1.bf16.msra.mxu0 %v1524
    %2052 = vmatprep.subr.bf16.mxu0 %v1533
    %2053 = vmatpush1.bf16.msra.mxu0 %v1532
    %2054 = vmatprep.subr.bf16.mxu0 %v1541
    %2055 = vmatpush1.bf16.msra.mxu0 %v1540
    %2056 = vmatprep.subr.bf16.mxu0 %v1549
    %2057 = vmatpush1.bf16.msra.mxu0 %v1548
    %2058 = vmatprep.subr.bf16.mxu0 %v1557
    %2059 = vmatpush1.bf16.msra.mxu0 %v1556
    %2060 = vmatprep.mubr.bf16.mxu0 %v407
    %2061 = vmatmul.mubr.bf16.gmra.mrb[0].mxu0 %v406
    %v2062 = vpop.f32.mrb[0].mxu0
    %v2063 = vadd.f32 0.0, %v2062
    %v2064 = vpop.f32.mrb[0].mxu0
    %v2065 = vadd.f32 0.0, %v2064
    %v2066 = vpop.f32.mrb[0].mxu0
    %v2067 = vpop.f32.mrb[0].mxu0
    %2068 = vdwg.mxu0
    %2069 = vmatprep.subr.bf16.mxu0 %v1565
    %2070 = vmatpush1.bf16.msra.mxu0 %v1564
    %2071 = vmatprep.subr.bf16.mxu0 %v1573
    %2072 = vmatpush1.bf16.msra.mxu0 %v1572
    %2073 = vmatprep.subr.bf16.mxu0 %v1581
    %2074 = vmatpush1.bf16.msra.mxu0 %v1580
    %2075 = vmatprep.subr.bf16.mxu0 %v1589
    %2076 = vmatpush1.bf16.msra.mxu0 %v1588
    %2077 = vmatprep.subr.bf16.mxu0 %v1597
    %2078 = vmatpush1.bf16.msra.mxu0 %v1596
    %2079 = vmatprep.subr.bf16.mxu0 %v1605
    %2080 = vmatpush1.bf16.msra.mxu0 %v1604
    %2081 = vmatprep.subr.bf16.mxu0 %v1613
    %2082 = vmatpush1.bf16.msra.mxu0 %v1612
    %2083 = vmatprep.subr.bf16.mxu0 %v1621
    %2084 = vmatpush1.bf16.msra.mxu0 %v1620
    %2085 = vmatprep.subr.bf16.mxu0 %v1629
    %2086 = vmatpush1.bf16.msra.mxu0 %v1628
    %2087 = vmatprep.subr.bf16.mxu0 %v1637
    %2088 = vmatpush1.bf16.msra.mxu0 %v1636
    %2089 = vmatprep.subr.bf16.mxu0 %v1645
    %2090 = vmatpush1.bf16.msra.mxu0 %v1644
    %2091 = vmatprep.subr.bf16.mxu0 %v1653
    %2092 = vmatpush1.bf16.msra.mxu0 %v1652
    %2093 = vmatprep.subr.bf16.mxu0 %v1661
    %2094 = vmatpush1.bf16.msra.mxu0 %v1660
    %2095 = vmatprep.subr.bf16.mxu0 %v1669
    %2096 = vmatpush1.bf16.msra.mxu0 %v1668
    %2097 = vmatprep.subr.bf16.mxu0 %v1677
    %2098 = vmatpush1.bf16.msra.mxu0 %v1676
    %2099 = vmatprep.subr.bf16.mxu0 %v1685
    %2100 = vmatpush1.bf16.msra.mxu0 %v1684
    %2101 = vmatprep.mubr.bf16.mxu0 %v409
    %2102 = vmatmul.mubr.bf16.gmra.mrb[0].mxu0 %v408
    %v2103 = vpop.f32.mrb[0].mxu0
    %v2104 = vadd.f32 %v2063, %v2103
    %v2105 = vpop.f32.mrb[0].mxu0
    %v2106 = vadd.f32 %v2065, %v2105
    %v2107 = vpop.f32.mrb[0].mxu0
    %v2108 = vpop.f32.mrb[0].mxu0
    %2109 = vdwg.mxu0
    %2110 = vmatprep.subr.bf16.mxu0 %v1439
    %2111 = vmatpush1.bf16.msra.mxu0 %v1438
    %2112 = vmatprep.subr.bf16.mxu0 %v1447
    %2113 = vmatpush1.bf16.msra.mxu0 %v1446
    %2114 = vmatprep.subr.bf16.mxu0 %v1455
    %2115 = vmatpush1.bf16.msra.mxu0 %v1454
    %2116 = vmatprep.subr.bf16.mxu0 %v1463
    %2117 = vmatpush1.bf16.msra.mxu0 %v1462
    %2118 = vmatprep.subr.bf16.mxu0 %v1471
    %2119 = vmatpush1.bf16.msra.mxu0 %v1470
    %2120 = vmatprep.subr.bf16.mxu0 %v1479
    %2121 = vmatpush1.bf16.msra.mxu0 %v1478
    %2122 = vmatprep.subr.bf16.mxu0 %v1487
    %2123 = vmatpush1.bf16.msra.mxu0 %v1486
    %2124 = vmatprep.subr.bf16.mxu0 %v1495
    %2125 = vmatpush1.bf16.msra.mxu0 %v1494
    %2126 = vmatprep.subr.bf16.mxu0 %v1503
    %2127 = vmatpush1.bf16.msra.mxu0 %v1502
    %2128 = vmatprep.subr.bf16.mxu0 %v1511
    %2129 = vmatpush1.bf16.msra.mxu0 %v1510
    %2130 = vmatprep.subr.bf16.mxu0 %v1519
    %2131 = vmatpush1.bf16.msra.mxu0 %v1518
    %2132 = vmatprep.subr.bf16.mxu0 %v1527
    %2133 = vmatpush1.bf16.msra.mxu0 %v1526
    %2134 = vmatprep.subr.bf16.mxu0 %v1535
    %2135 = vmatpush1.bf16.msra.mxu0 %v1534
    %2136 = vmatprep.subr.bf16.mxu0 %v1543
    %2137 = vmatpush1.bf16.msra.mxu0 %v1542
    %2138 = vmatprep.subr.bf16.mxu0 %v1551
    %2139 = vmatpush1.bf16.msra.mxu0 %v1550
    %2140 = vmatprep.subr.bf16.mxu0 %v1559
    %2141 = vmatpush1.bf16.msra.mxu0 %v1558
    %2142 = vmatprep.mubr.bf16.mxu0 %v407
    %2143 = vmatmul.mubr.bf16.gmra.mrb[0].mxu0 %v406
    %v2144 = vpop.f32.mrb[0].mxu0
    %v2145 = vadd.f32 0.0, %v2144
    %v2146 = vpop.f32.mrb[0].mxu0
    %v2147 = vadd.f32 0.0, %v2146
    %v2148 = vpop.f32.mrb[0].mxu0
    %v2149 = vpop.f32.mrb[0].mxu0
    %2150 = vdwg.mxu0
    %2151 = vmatprep.subr.bf16.mxu0 %v1567
    %2152 = vmatpush1.bf16.msra.mxu0 %v1566
    %2153 = vmatprep.subr.bf16.mxu0 %v1575
    %2154 = vmatpush1.bf16.msra.mxu0 %v1574
    %2155 = vmatprep.subr.bf16.mxu0 %v1583
    %2156 = vmatpush1.bf16.msra.mxu0 %v1582
    %2157 = vmatprep.subr.bf16.mxu0 %v1591
    %2158 = vmatpush1.bf16.msra.mxu0 %v1590
    %2159 = vmatprep.subr.bf16.mxu0 %v1599
    %2160 = vmatpush1.bf16.msra.mxu0 %v1598
    %2161 = vmatprep.subr.bf16.mxu0 %v1607
    %2162 = vmatpush1.bf16.msra.mxu0 %v1606
    %2163 = vmatprep.subr.bf16.mxu0 %v1615
    %2164 = vmatpush1.bf16.msra.mxu0 %v1614
    %2165 = vmatprep.subr.bf16.mxu0 %v1623
    %2166 = vmatpush1.bf16.msra.mxu0 %v1622
    %2167 = vmatprep.subr.bf16.mxu0 %v1631
    %2168 = vmatpush1.bf16.msra.mxu0 %v1630
    %2169 = vmatprep.subr.bf16.mxu0 %v1639
    %2170 = vmatpush1.bf16.msra.mxu0 %v1638
    %2171 = vmatprep.subr.bf16.mxu0 %v1647
    %2172 = vmatpush1.bf16.msra.mxu0 %v1646
    %2173 = vmatprep.subr.bf16.mxu0 %v1655
    %2174 = vmatpush1.bf16.msra.mxu0 %v1654
    %2175 = vmatprep.subr.bf16.mxu0 %v1663
    %2176 = vmatpush1.bf16.msra.mxu0 %v1662
    %2177 = vmatprep.subr.bf16.mxu0 %v1671
    %2178 = vmatpush1.bf16.msra.mxu0 %v1670
    %2179 = vmatprep.subr.bf16.mxu0 %v1679
    %2180 = vmatpush1.bf16.msra.mxu0 %v1678
    %2181 = vmatprep.subr.bf16.mxu0 %v1687
    %2182 = vmatpush1.bf16.msra.mxu0 %v1686
    %2183 = vmatprep.mubr.bf16.mxu0 %v409
    %2184 = vmatmul.mubr.bf16.gmra.mrb[0].mxu0 %v408
    %v2185 = vpop.f32.mrb[0].mxu0
    %v2186 = vadd.f32 %v2145, %v2185
    %v2187 = vpop.f32.mrb[0].mxu0
    %v2188 = vadd.f32 %v2147, %v2187
    %v2189 = vpop.f32.mrb[0].mxu0
    %v2190 = vpop.f32.mrb[0].mxu0
    %2191 = vdwg.mxu0
    %2192 = vmatprep.subr.bf16.mxu0 %v1441
    %2193 = vmatpush1.bf16.msra.mxu0 %v1440
    %2194 = vmatprep.subr.bf16.mxu0 %v1449
    %2195 = vmatpush1.bf16.msra.mxu0 %v1448
    %2196 = vmatprep.subr.bf16.mxu0 %v1457
    %2197 = vmatpush1.bf16.msra.mxu0 %v1456
    %2198 = vmatprep.subr.bf16.mxu0 %v1465
    %2199 = vmatpush1.bf16.msra.mxu0 %v1464
    %2200 = vmatprep.subr.bf16.mxu0 %v1473
    %2201 = vmatpush1.bf16.msra.mxu0 %v1472
    %2202 = vmatprep.subr.bf16.mxu0 %v1481
    %2203 = vmatpush1.bf16.msra.mxu0 %v1480
    %2204 = vmatprep.subr.bf16.mxu0 %v1489
    %2205 = vmatpush1.bf16.msra.mxu0 %v1488
    %2206 = vmatprep.subr.bf16.mxu0 %v1497
    %2207 = vmatpush1.bf16.msra.mxu0 %v1496
    %2208 = vmatprep.subr.bf16.mxu0 %v1505
    %2209 = vmatpush1.bf16.msra.mxu0 %v1504
    %2210 = vmatprep.subr.bf16.mxu0 %v1513
    %2211 = vmatpush1.bf16.msra.mxu0 %v1512
    %2212 = vmatprep.subr.bf16.mxu0 %v1521
    %2213 = vmatpush1.bf16.msra.mxu0 %v1520
    %2214 = vmatprep.subr.bf16.mxu0 %v1529
    %2215 = vmatpush1.bf16.msra.mxu0 %v1528
    %2216 = vmatprep.subr.bf16.mxu0 %v1537
    %2217 = vmatpush1.bf16.msra.mxu0 %v1536
    %2218 = vmatprep.subr.bf16.mxu0 %v1545
    %2219 = vmatpush1.bf16.msra.mxu0 %v1544
    %2220 = vmatprep.subr.bf16.mxu0 %v1553
    %2221 = vmatpush1.bf16.msra.mxu0 %v1552
    %2222 = vmatprep.subr.bf16.mxu0 %v1561
    %2223 = vmatpush1.bf16.msra.mxu0 %v1560
    %2224 = vmatprep.mubr.bf16.mxu0 %v407
    %2225 = vmatmul.mubr.bf16.gmra.mrb[0].mxu0 %v406
    %v2226 = vpop.f32.mrb[0].mxu0
    %v2227 = vadd.f32 0.0, %v2226
    %v2228 = vpop.f32.mrb[0].mxu0
    %v2229 = vadd.f32 0.0, %v2228
    %v2230 = vpop.f32.mrb[0].mxu0
    %v2231 = vpop.f32.mrb[0].mxu0
    %2232 = vdwg.mxu0
    %2233 = vmatprep.subr.bf16.mxu0 %v1569
    %2234 = vmatpush1.bf16.msra.mxu0 %v1568
    %2235 = vmatprep.subr.bf16.mxu0 %v1577
    %2236 = vmatpush1.bf16.msra.mxu0 %v1576
    %2237 = vmatprep.subr.bf16.mxu0 %v1585
    %2238 = vmatpush1.bf16.msra.mxu0 %v1584
    %2239 = vmatprep.subr.bf16.mxu0 %v1593
    %2240 = vmatpush1.bf16.msra.mxu0 %v1592
    %2241 = vmatprep.subr.bf16.mxu0 %v1601
    %2242 = vmatpush1.bf16.msra.mxu0 %v1600
    %2243 = vmatprep.subr.bf16.mxu0 %v1609
    %2244 = vmatpush1.bf16.msra.mxu0 %v1608
    %2245 = vmatprep.subr.bf16.mxu0 %v1617
    %2246 = vmatpush1.bf16.msra.mxu0 %v1616
    %2247 = vmatprep.subr.bf16.mxu0 %v1625
    %2248 = vmatpush1.bf16.msra.mxu0 %v1624
    %2249 = vmatprep.subr.bf16.mxu0 %v1633
    %2250 = vmatpush1.bf16.msra.mxu0 %v1632
    %2251 = vmatprep.subr.bf16.mxu0 %v1641
    %2252 = vmatpush1.bf16.msra.mxu0 %v1640
    %2253 = vmatprep.subr.bf16.mxu0 %v1649
    %2254 = vmatpush1.bf16.msra.mxu0 %v1648
    %2255 = vmatprep.subr.bf16.mxu0 %v1657
    %2256 = vmatpush1.bf16.msra.mxu0 %v1656
    %2257 = vmatprep.subr.bf16.mxu0 %v1665
    %2258 = vmatpush1.bf16.msra.mxu0 %v1664
    %2259 = vmatprep.subr.bf16.mxu0 %v1673
    %2260 = vmatpush1.bf16.msra.mxu0 %v1672
    %2261 = vmatprep.subr.bf16.mxu0 %v1681
    %2262 = vmatpush1.bf16.msra.mxu0 %v1680
    %2263 = vmatprep.subr.bf16.mxu0 %v1689
    %2264 = vmatpush1.bf16.msra.mxu0 %v1688
    %2265 = vmatprep.mubr.bf16.mxu0 %v409
    %2266 = vmatmul.mubr.bf16.gmra.mrb[0].mxu0 %v408
    %v2267 = vpop.f32.mrb[0].mxu0
    %v2268 = vadd.f32 %v2227, %v2267
    %v2269 = vpop.f32.mrb[0].mxu0
    %v2270 = vadd.f32 %v2229, %v2269
    %v2271 = vpop.f32.mrb[0].mxu0
    %v2272 = vpop.f32.mrb[0].mxu0
    %2273 = vdwg.mxu0
    %v2274 = vpack.c.bf16 %v2022, %v2022
    %v2275 = vpack.c.bf16 %v2024, %v2024
    %v2276 = vpack.c.bf16 %v2104, %v2104
    %v2277 = vpack.c.bf16 %v2106, %v2106
    %v2278 = vpack.c.bf16 %v2186, %v2186
    %v2279 = vpack.c.bf16 %v2188, %v2188
    %v2280 = vpack.c.bf16 %v2268, %v2268
    %v2281 = vpack.c.bf16 %v2270, %v2270
    %v2282 = vld [vmem:[%s4] sm:$0xff]
    %v2284 = vlaneseq
    %v2285 = vshrl.u32 %v2284, 7
    %v2286 = vsub.s32 0, %v2285
    %v2287 = vrot.slane %v2282, %v2286
    %v2288 = vlaneseq
    %v2289 = vshrl.u32 %v2288, 7
    %v2290 = vsub.s32 1, %v2289
    %v2291 = vrot.slane %v2282, %v2290
    %v2292 = vlaneseq
    %v2293 = vshrl.u32 %v2292, 7
    %v2294 = vsub.s32 2, %v2293
    %v2295 = vrot.slane %v2282, %v2294
    %v2296 = vlaneseq
    %v2297 = vshrl.u32 %v2296, 7
    %v2298 = vsub.s32 3, %v2297
    %v2299 = vrot.slane %v2282, %v2298
    %v2300 = vlaneseq
    %v2301 = vshrl.u32 %v2300, 7
    %v2302 = vsub.s32 4, %v2301
    %v2303 = vrot.slane %v2282, %v2302
    %v2304 = vlaneseq
    %v2305 = vshrl.u32 %v2304, 7
    %v2306 = vsub.s32 5, %v2305
    %v2307 = vrot.slane %v2282, %v2306
    %v2308 = vlaneseq
    %v2309 = vshrl.u32 %v2308, 7
    %v2310 = vsub.s32 6, %v2309
    %v2311 = vrot.slane %v2282, %v2310
    %v2312 = vlaneseq
    %v2313 = vshrl.u32 %v2312, 7
    %v2314 = vsub.s32 7, %v2313
    %v2315 = vrot.slane %v2282, %v2314
    %v2324 = vpack.c.bf16 %v2287, %v2287
    %v2325 = vpack.c.bf16 %v2291, %v2291
    %v2326 = vpack.c.bf16 %v2295, %v2295
    %v2327 = vpack.c.bf16 %v2299, %v2299
    %v2328 = vpack.c.bf16 %v2303, %v2303
    %v2329 = vpack.c.bf16 %v2307, %v2307
    %v2330 = vpack.c.bf16 %v2311, %v2311
    %v2331 = vpack.c.bf16 %v2315, %v2315
    %v2333 = vpack.i.b16 %v2324, %v2324
    %v2335 = vlaneseq
    %v2336 = vshrl.u32 %v2335, 7
    %v2337 = vsub.s32 0, %v2336
    %v2338 = vrot.slane %v2333, %v2337
    %v2340 = vpack.i.b16 %v2325, %v2325
    %v2342 = vlaneseq
    %v2343 = vshrl.u32 %v2342, 7
    %v2344 = vsub.s32 0, %v2343
    %v2345 = vrot.slane %v2340, %v2344
    %v2347 = vpack.i.b16 %v2326, %v2326
    %v2349 = vlaneseq
    %v2350 = vshrl.u32 %v2349, 7
    %v2351 = vsub.s32 0, %v2350
    %v2352 = vrot.slane %v2347, %v2351
    %v2354 = vpack.i.b16 %v2327, %v2327
    %v2356 = vlaneseq
    %v2357 = vshrl.u32 %v2356, 7
    %v2358 = vsub.s32 0, %v2357
    %v2359 = vrot.slane %v2354, %v2358
    %v2361 = vpack.i.b16 %v2328, %v2328
    %v2363 = vlaneseq
    %v2364 = vshrl.u32 %v2363, 7
    %v2365 = vsub.s32 0, %v2364
    %v2366 = vrot.slane %v2361, %v2365
    %v2368 = vpack.i.b16 %v2329, %v2329
    %v2370 = vlaneseq
    %v2371 = vshrl.u32 %v2370, 7
    %v2372 = vsub.s32 0, %v2371
    %v2373 = vrot.slane %v2368, %v2372
    %v2375 = vpack.i.b16 %v2330, %v2330
    %v2377 = vlaneseq
    %v2378 = vshrl.u32 %v2377, 7
    %v2379 = vsub.s32 0, %v2378
    %v2380 = vrot.slane %v2375, %v2379
    %v2382 = vpack.i.b16 %v2331, %v2331
    %v2384 = vlaneseq
    %v2385 = vshrl.u32 %v2384, 7
    %v2386 = vsub.s32 0, %v2385
    %v2387 = vrot.slane %v2382, %v2386
    %v2388 = vadd.bf16 %v2274, %v2338
    %v2389 = vadd.bf16 %v2275, %v2345
    %v2390 = vadd.bf16 %v2276, %v2352
    %v2391 = vadd.bf16 %v2277, %v2359
    %v2392 = vadd.bf16 %v2278, %v2366
    %v2393 = vadd.bf16 %v2279, %v2373
    %v2394 = vadd.bf16 %v2280, %v2380
    %v2395 = vadd.bf16 %v2281, %v2387
    %v2396 = vmax.bf16 %v2388, 0
    %v2397 = vmax.bf16 %v2389, 0
    %v2398 = vmax.bf16 %v2390, 0
    %v2399 = vmax.bf16 %v2391, 0
    %v2400 = vmax.bf16 %v2392, 0
    %v2401 = vmax.bf16 %v2393, 0
    %v2402 = vmax.bf16 %v2394, 0
    %v2403 = vmax.bf16 %v2395, 0
    %v2404 = vld [vmem:[#allocation7] sm:$0xf]
    %v2405 = vld [vmem:[#allocation7 + $0x4] sm:$0xf]
    %v2406 = vld [vmem:[#allocation7 + $0x8] sm:$0xf]
    %v2407 = vld [vmem:[#allocation7 + $0xc] sm:$0xf]
    %v2408 = vld [vmem:[#allocation7 + $0x10] sm:$0xf]
    %v2409 = vld [vmem:[#allocation7 + $0x14] sm:$0xf]
    %v2410 = vld [vmem:[#allocation7 + $0x18] sm:$0xf]
    %v2411 = vld [vmem:[#allocation7 + $0x1c] sm:$0xf]
    %v2412 = vld [vmem:[#allocation7 + $0x20] sm:$0xf]
    %v2413 = vld [vmem:[#allocation7 + $0x24] sm:$0xf]
    %v2414 = vld [vmem:[#allocation7 + $0x28] sm:$0xf]
    %v2415 = vld [vmem:[#allocation7 + $0x2c] sm:$0xf]
    %v2416 = vld [vmem:[#allocation7 + $0x30] sm:$0xf]
    %v2417 = vld [vmem:[#allocation7 + $0x34] sm:$0xf]
    %v2418 = vld [vmem:[#allocation7 + $0x38] sm:$0xf]
    %v2419 = vld [vmem:[#allocation7 + $0x3c] sm:$0xf]
    %v2420 = vld [vmem:[#allocation7 + $0x40] sm:$0xf]
    %v2421 = vld [vmem:[#allocation7 + $0x44] sm:$0xf]
    %v2422 = vld [vmem:[#allocation7 + $0x48] sm:$0xf]
    %v2423 = vld [vmem:[#allocation7 + $0x4c] sm:$0xf]
    %v2424 = vld [vmem:[#allocation7 + $0x50] sm:$0xf]
    %v2425 = vld [vmem:[#allocation7 + $0x54] sm:$0xf]
    %v2426 = vld [vmem:[#allocation7 + $0x58] sm:$0xf]
    %v2427 = vld [vmem:[#allocation7 + $0x5c] sm:$0xf]
    %v2428 = vld [vmem:[#allocation7 + $0x60] sm:$0xf]
    %v2429 = vld [vmem:[#allocation7 + $0x64] sm:$0xf]
    %v2430 = vld [vmem:[#allocation7 + $0x68] sm:$0xf]
    %v2431 = vld [vmem:[#allocation7 + $0x6c] sm:$0xf]
    %v2432 = vld [vmem:[#allocation7 + $0x70] sm:$0xf]
    %v2433 = vld [vmem:[#allocation7 + $0x74] sm:$0xf]
    %v2434 = vld [vmem:[#allocation7 + $0x78] sm:$0xf]
    %v2435 = vld [vmem:[#allocation7 + $0x7c] sm:$0xf]
    %v2436 = vld [vmem:[#allocation7 + $0x80] sm:$0xf]
    %v2437 = vld [vmem:[#allocation7 + $0x84] sm:$0xf]
    %v2438 = vld [vmem:[#allocation7 + $0x88] sm:$0xf]
    %v2439 = vld [vmem:[#allocation7 + $0x8c] sm:$0xf]
    %v2440 = vld [vmem:[#allocation7 + $0x90] sm:$0xf]
    %v2441 = vld [vmem:[#allocation7 + $0x94] sm:$0xf]
    %v2442 = vld [vmem:[#allocation7 + $0x98] sm:$0xf]
    %v2443 = vld [vmem:[#allocation7 + $0x9c] sm:$0xf]
    %v2444 = vld [vmem:[#allocation7 + $0xa0] sm:$0xf]
    %v2445 = vld [vmem:[#allocation7 + $0xa4] sm:$0xf]
    %v2446 = vld [vmem:[#allocation7 + $0xa8] sm:$0xf]
    %v2447 = vld [vmem:[#allocation7 + $0xac] sm:$0xf]
    %v2448 = vld [vmem:[#allocation7 + $0xb0] sm:$0xf]
    %v2449 = vld [vmem:[#allocation7 + $0xb4] sm:$0xf]
    %v2450 = vld [vmem:[#allocation7 + $0xb8] sm:$0xf]
    %v2451 = vld [vmem:[#allocation7 + $0xbc] sm:$0xf]
    %v2452 = vld [vmem:[#allocation7 + $0xc0] sm:$0xf]
    %v2453 = vld [vmem:[#allocation7 + $0xc4] sm:$0xf]
    %v2454 = vld [vmem:[#allocation7 + $0xc8] sm:$0xf]
    %v2455 = vld [vmem:[#allocation7 + $0xcc] sm:$0xf]
    %v2456 = vld [vmem:[#allocation7 + $0xd0] sm:$0xf]
    %v2457 = vld [vmem:[#allocation7 + $0xd4] sm:$0xf]
    %v2458 = vld [vmem:[#allocation7 + $0xd8] sm:$0xf]
    %v2459 = vld [vmem:[#allocation7 + $0xdc] sm:$0xf]
    %v2460 = vld [vmem:[#allocation7 + $0xe0] sm:$0xf]
    %v2461 = vld [vmem:[#allocation7 + $0xe4] sm:$0xf]
    %v2462 = vld [vmem:[#allocation7 + $0xe8] sm:$0xf]
    %v2463 = vld [vmem:[#allocation7 + $0xec] sm:$0xf]
    %v2464 = vld [vmem:[#allocation7 + $0xf0] sm:$0xf]
    %v2465 = vld [vmem:[#allocation7 + $0xf4] sm:$0xf]
    %v2466 = vld [vmem:[#allocation7 + $0xf8] sm:$0xf]
    %v2467 = vld [vmem:[#allocation7 + $0xfc] sm:$0xf]
    %v2468 = vld [vmem:[#allocation7 + $0x100] sm:$0xf]
    %v2469 = vld [vmem:[#allocation7 + $0x104] sm:$0xf]
    %v2470 = vld [vmem:[#allocation7 + $0x108] sm:$0xf]
    %v2471 = vld [vmem:[#allocation7 + $0x10c] sm:$0xf]
    %v2472 = vld [vmem:[#allocation7 + $0x110] sm:$0xf]
    %v2473 = vld [vmem:[#allocation7 + $0x114] sm:$0xf]
    %v2474 = vld [vmem:[#allocation7 + $0x118] sm:$0xf]
    %v2475 = vld [vmem:[#allocation7 + $0x11c] sm:$0xf]
    %v2476 = vld [vmem:[#allocation7 + $0x120] sm:$0xf]
    %v2477 = vld [vmem:[#allocation7 + $0x124] sm:$0xf]
    %v2478 = vld [vmem:[#allocation7 + $0x128] sm:$0xf]
    %v2479 = vld [vmem:[#allocation7 + $0x12c] sm:$0xf]
    %v2480 = vld [vmem:[#allocation7 + $0x130] sm:$0xf]
    %v2481 = vld [vmem:[#allocation7 + $0x134] sm:$0xf]
    %v2482 = vld [vmem:[#allocation7 + $0x138] sm:$0xf]
    %v2483 = vld [vmem:[#allocation7 + $0x13c] sm:$0xf]
    %v2484 = vld [vmem:[#allocation7 + $0x140] sm:$0xf]
    %v2485 = vld [vmem:[#allocation7 + $0x144] sm:$0xf]
    %v2486 = vld [vmem:[#allocation7 + $0x148] sm:$0xf]
    %v2487 = vld [vmem:[#allocation7 + $0x14c] sm:$0xf]
    %v2488 = vld [vmem:[#allocation7 + $0x150] sm:$0xf]
    %v2489 = vld [vmem:[#allocation7 + $0x154] sm:$0xf]
    %v2490 = vld [vmem:[#allocation7 + $0x158] sm:$0xf]
    %v2491 = vld [vmem:[#allocation7 + $0x15c] sm:$0xf]
    %v2492 = vld [vmem:[#allocation7 + $0x160] sm:$0xf]
    %v2493 = vld [vmem:[#allocation7 + $0x164] sm:$0xf]
    %v2494 = vld [vmem:[#allocation7 + $0x168] sm:$0xf]
    %v2495 = vld [vmem:[#allocation7 + $0x16c] sm:$0xf]
    %v2496 = vld [vmem:[#allocation7 + $0x170] sm:$0xf]
    %v2497 = vld [vmem:[#allocation7 + $0x174] sm:$0xf]
    %v2498 = vld [vmem:[#allocation7 + $0x178] sm:$0xf]
    %v2499 = vld [vmem:[#allocation7 + $0x17c] sm:$0xf]
    %v2500 = vld [vmem:[#allocation7 + $0x180] sm:$0xf]
    %v2501 = vld [vmem:[#allocation7 + $0x184] sm:$0xf]
    %v2502 = vld [vmem:[#allocation7 + $0x188] sm:$0xf]
    %v2503 = vld [vmem:[#allocation7 + $0x18c] sm:$0xf]
    %v2504 = vld [vmem:[#allocation7 + $0x190] sm:$0xf]
    %v2505 = vld [vmem:[#allocation7 + $0x194] sm:$0xf]
    %v2506 = vld [vmem:[#allocation7 + $0x198] sm:$0xf]
    %v2507 = vld [vmem:[#allocation7 + $0x19c] sm:$0xf]
    %v2508 = vld [vmem:[#allocation7 + $0x1a0] sm:$0xf]
    %v2509 = vld [vmem:[#allocation7 + $0x1a4] sm:$0xf]
    %v2510 = vld [vmem:[#allocation7 + $0x1a8] sm:$0xf]
    %v2511 = vld [vmem:[#allocation7 + $0x1ac] sm:$0xf]
    %v2512 = vld [vmem:[#allocation7 + $0x1b0] sm:$0xf]
    %v2513 = vld [vmem:[#allocation7 + $0x1b4] sm:$0xf]
    %v2514 = vld [vmem:[#allocation7 + $0x1b8] sm:$0xf]
    %v2515 = vld [vmem:[#allocation7 + $0x1bc] sm:$0xf]
    %v2516 = vld [vmem:[#allocation7 + $0x1c0] sm:$0xf]
    %v2517 = vld [vmem:[#allocation7 + $0x1c4] sm:$0xf]
    %v2518 = vld [vmem:[#allocation7 + $0x1c8] sm:$0xf]
    %v2519 = vld [vmem:[#allocation7 + $0x1cc] sm:$0xf]
    %v2520 = vld [vmem:[#allocation7 + $0x1d0] sm:$0xf]
    %v2521 = vld [vmem:[#allocation7 + $0x1d4] sm:$0xf]
    %v2522 = vld [vmem:[#allocation7 + $0x1d8] sm:$0xf]
    %v2523 = vld [vmem:[#allocation7 + $0x1dc] sm:$0xf]
    %v2524 = vld [vmem:[#allocation7 + $0x1e0] sm:$0xf]
    %v2525 = vld [vmem:[#allocation7 + $0x1e4] sm:$0xf]
    %v2526 = vld [vmem:[#allocation7 + $0x1e8] sm:$0xf]
    %v2527 = vld [vmem:[#allocation7 + $0x1ec] sm:$0xf]
    %v2528 = vld [vmem:[#allocation7 + $0x1f0] sm:$0xf]
    %v2529 = vld [vmem:[#allocation7 + $0x1f4] sm:$0xf]
    %v2530 = vld [vmem:[#allocation7 + $0x1f8] sm:$0xf]
    %v2531 = vld [vmem:[#allocation7 + $0x1fc] sm:$0xf]
    %v2532 = vld [vmem:[%s6] sm:$0x1]
    %v2534 = vlaneseq
    %v2535 = vshrl.u32 %v2534, 7
    %v2536 = vsub.s32 0, %v2535
    %v2537 = vrot.slane %v2532, %v2536
    %v2667 = vunpack.c.l.b16 %v2404
    %v2668 = vunpack.c.l.b16 %v2405
    %v2669 = vunpack.c.l.b16 %v2406
    %v2670 = vunpack.c.l.b16 %v2407
    %v2671 = vunpack.c.l.b16 %v2408
    %v2672 = vunpack.c.l.b16 %v2409
    %v2673 = vunpack.c.l.b16 %v2410
    %v2674 = vunpack.c.l.b16 %v2411
    %v2675 = vunpack.c.l.b16 %v2412
    %v2676 = vunpack.c.l.b16 %v2413
    %v2677 = vunpack.c.l.b16 %v2414
    %v2678 = vunpack.c.l.b16 %v2415
    %v2679 = vunpack.c.l.b16 %v2416
    %v2680 = vunpack.c.l.b16 %v2417
    %v2681 = vunpack.c.l.b16 %v2418
    %v2682 = vunpack.c.l.b16 %v2419
    %v2683 = vunpack.c.l.b16 %v2420
    %v2684 = vunpack.c.l.b16 %v2421
    %v2685 = vunpack.c.l.b16 %v2422
    %v2686 = vunpack.c.l.b16 %v2423
    %v2687 = vunpack.c.l.b16 %v2424
    %v2688 = vunpack.c.l.b16 %v2425
    %v2689 = vunpack.c.l.b16 %v2426
    %v2690 = vunpack.c.l.b16 %v2427
    %v2691 = vunpack.c.l.b16 %v2428
    %v2692 = vunpack.c.l.b16 %v2429
    %v2693 = vunpack.c.l.b16 %v2430
    %v2694 = vunpack.c.l.b16 %v2431
    %v2695 = vunpack.c.l.b16 %v2432
    %v2696 = vunpack.c.l.b16 %v2433
    %v2697 = vunpack.c.l.b16 %v2434
    %v2698 = vunpack.c.l.b16 %v2435
    %v2699 = vunpack.c.l.b16 %v2436
    %v2700 = vunpack.c.l.b16 %v2437
    %v2701 = vunpack.c.l.b16 %v2438
    %v2702 = vunpack.c.l.b16 %v2439
    %v2703 = vunpack.c.l.b16 %v2440
    %v2704 = vunpack.c.l.b16 %v2441
    %v2705 = vunpack.c.l.b16 %v2442
    %v2706 = vunpack.c.l.b16 %v2443
    %v2707 = vunpack.c.l.b16 %v2444
    %v2708 = vunpack.c.l.b16 %v2445
    %v2709 = vunpack.c.l.b16 %v2446
    %v2710 = vunpack.c.l.b16 %v2447
    %v2711 = vunpack.c.l.b16 %v2448
    %v2712 = vunpack.c.l.b16 %v2449
    %v2713 = vunpack.c.l.b16 %v2450
    %v2714 = vunpack.c.l.b16 %v2451
    %v2715 = vunpack.c.l.b16 %v2452
    %v2716 = vunpack.c.l.b16 %v2453
    %v2717 = vunpack.c.l.b16 %v2454
    %v2718 = vunpack.c.l.b16 %v2455
    %v2719 = vunpack.c.l.b16 %v2456
    %v2720 = vunpack.c.l.b16 %v2457
    %v2721 = vunpack.c.l.b16 %v2458
    %v2722 = vunpack.c.l.b16 %v2459
    %v2723 = vunpack.c.l.b16 %v2460
    %v2724 = vunpack.c.l.b16 %v2461
    %v2725 = vunpack.c.l.b16 %v2462
    %v2726 = vunpack.c.l.b16 %v2463
    %v2727 = vunpack.c.l.b16 %v2464
    %v2728 = vunpack.c.l.b16 %v2465
    %v2729 = vunpack.c.l.b16 %v2466
    %v2730 = vunpack.c.l.b16 %v2467
    %v2731 = vunpack.c.l.b16 %v2468
    %v2732 = vunpack.c.l.b16 %v2469
    %v2733 = vunpack.c.l.b16 %v2470
    %v2734 = vunpack.c.l.b16 %v2471
    %v2735 = vunpack.c.l.b16 %v2472
    %v2736 = vunpack.c.l.b16 %v2473
    %v2737 = vunpack.c.l.b16 %v2474
    %v2738 = vunpack.c.l.b16 %v2475
    %v2739 = vunpack.c.l.b16 %v2476
    %v2740 = vunpack.c.l.b16 %v2477
    %v2741 = vunpack.c.l.b16 %v2478
    %v2742 = vunpack.c.l.b16 %v2479
    %v2743 = vunpack.c.l.b16 %v2480
    %v2744 = vunpack.c.l.b16 %v2481
    %v2745 = vunpack.c.l.b16 %v2482
    %v2746 = vunpack.c.l.b16 %v2483
    %v2747 = vunpack.c.l.b16 %v2484
    %v2748 = vunpack.c.l.b16 %v2485
    %v2749 = vunpack.c.l.b16 %v2486
    %v2750 = vunpack.c.l.b16 %v2487
    %v2751 = vunpack.c.l.b16 %v2488
    %v2752 = vunpack.c.l.b16 %v2489
    %v2753 = vunpack.c.l.b16 %v2490
    %v2754 = vunpack.c.l.b16 %v2491
    %v2755 = vunpack.c.l.b16 %v2492
    %v2756 = vunpack.c.l.b16 %v2493
    %v2757 = vunpack.c.l.b16 %v2494
    %v2758 = vunpack.c.l.b16 %v2495
    %v2759 = vunpack.c.l.b16 %v2496
    %v2760 = vunpack.c.l.b16 %v2497
    %v2761 = vunpack.c.l.b16 %v2498
    %v2762 = vunpack.c.l.b16 %v2499
    %v2763 = vunpack.c.l.b16 %v2500
    %v2764 = vunpack.c.l.b16 %v2501
    %v2765 = vunpack.c.l.b16 %v2502
    %v2766 = vunpack.c.l.b16 %v2503
    %v2767 = vunpack.c.l.b16 %v2504
    %v2768 = vunpack.c.l.b16 %v2505
    %v2769 = vunpack.c.l.b16 %v2506
    %v2770 = vunpack.c.l.b16 %v2507
    %v2771 = vunpack.c.l.b16 %v2508
    %v2772 = vunpack.c.l.b16 %v2509
    %v2773 = vunpack.c.l.b16 %v2510
    %v2774 = vunpack.c.l.b16 %v2511
    %v2775 = vunpack.c.l.b16 %v2512
    %v2776 = vunpack.c.l.b16 %v2513
    %v2777 = vunpack.c.l.b16 %v2514
    %v2778 = vunpack.c.l.b16 %v2515
    %v2779 = vunpack.c.l.b16 %v2516
    %v2780 = vunpack.c.l.b16 %v2517
    %v2781 = vunpack.c.l.b16 %v2518
    %v2782 = vunpack.c.l.b16 %v2519
    %v2783 = vunpack.c.l.b16 %v2520
    %v2784 = vunpack.c.l.b16 %v2521
    %v2785 = vunpack.c.l.b16 %v2522
    %v2786 = vunpack.c.l.b16 %v2523
    %v2787 = vunpack.c.l.b16 %v2524
    %v2788 = vunpack.c.l.b16 %v2525
    %v2789 = vunpack.c.l.b16 %v2526
    %v2790 = vunpack.c.l.b16 %v2527
    %v2791 = vunpack.c.l.b16 %v2528
    %v2792 = vunpack.c.l.b16 %v2529
    %v2793 = vunpack.c.l.b16 %v2530
    %v2794 = vunpack.c.l.b16 %v2531
    %v2795 = vpack.c.b16 %v2668, %v2667
    %v2796 = vpack.c.b16 %v2670, %v2669
    %v2797 = vpack.c.b16 %v2672, %v2671
    %v2798 = vpack.c.b16 %v2674, %v2673
    %v2799 = vpack.c.b16 %v2676, %v2675
    %v2800 = vpack.c.b16 %v2678, %v2677
    %v2801 = vpack.c.b16 %v2680, %v2679
    %v2802 = vpack.c.b16 %v2682, %v2681
    %v2803 = vpack.c.b16 %v2684, %v2683
    %v2804 = vpack.c.b16 %v2686, %v2685
    %v2805 = vpack.c.b16 %v2688, %v2687
    %v2806 = vpack.c.b16 %v2690, %v2689
    %v2807 = vpack.c.b16 %v2692, %v2691
    %v2808 = vpack.c.b16 %v2694, %v2693
    %v2809 = vpack.c.b16 %v2696, %v2695
    %v2810 = vpack.c.b16 %v2698, %v2697
    %v2811 = vpack.c.b16 %v2700, %v2699
    %v2812 = vpack.c.b16 %v2702, %v2701
    %v2813 = vpack.c.b16 %v2704, %v2703
    %v2814 = vpack.c.b16 %v2706, %v2705
    %v2815 = vpack.c.b16 %v2708, %v2707
    %v2816 = vpack.c.b16 %v2710, %v2709
    %v2817 = vpack.c.b16 %v2712, %v2711
    %v2818 = vpack.c.b16 %v2714, %v2713
    %v2819 = vpack.c.b16 %v2716, %v2715
    %v2820 = vpack.c.b16 %v2718, %v2717
    %v2821 = vpack.c.b16 %v2720, %v2719
    %v2822 = vpack.c.b16 %v2722, %v2721
    %v2823 = vpack.c.b16 %v2724, %v2723
    %v2824 = vpack.c.b16 %v2726, %v2725
    %v2825 = vpack.c.b16 %v2728, %v2727
    %v2826 = vpack.c.b16 %v2730, %v2729
    %v2827 = vpack.c.b16 %v2732, %v2731
    %v2828 = vpack.c.b16 %v2734, %v2733
    %v2829 = vpack.c.b16 %v2736, %v2735
    %v2830 = vpack.c.b16 %v2738, %v2737
    %v2831 = vpack.c.b16 %v2740, %v2739
    %v2832 = vpack.c.b16 %v2742, %v2741
    %v2833 = vpack.c.b16 %v2744, %v2743
    %v2834 = vpack.c.b16 %v2746, %v2745
    %v2835 = vpack.c.b16 %v2748, %v2747
    %v2836 = vpack.c.b16 %v2750, %v2749
    %v2837 = vpack.c.b16 %v2752, %v2751
    %v2838 = vpack.c.b16 %v2754, %v2753
    %v2839 = vpack.c.b16 %v2756, %v2755
    %v2840 = vpack.c.b16 %v2758, %v2757
    %v2841 = vpack.c.b16 %v2760, %v2759
    %v2842 = vpack.c.b16 %v2762, %v2761
    %v2843 = vpack.c.b16 %v2764, %v2763
    %v2844 = vpack.c.b16 %v2766, %v2765
    %v2845 = vpack.c.b16 %v2768, %v2767
    %v2846 = vpack.c.b16 %v2770, %v2769
    %v2847 = vpack.c.b16 %v2772, %v2771
    %v2848 = vpack.c.b16 %v2774, %v2773
    %v2849 = vpack.c.b16 %v2776, %v2775
    %v2850 = vpack.c.b16 %v2778, %v2777
    %v2851 = vpack.c.b16 %v2780, %v2779
    %v2852 = vpack.c.b16 %v2782, %v2781
    %v2853 = vpack.c.b16 %v2784, %v2783
    %v2854 = vpack.c.b16 %v2786, %v2785
    %v2855 = vpack.c.b16 %v2788, %v2787
    %v2856 = vpack.c.b16 %v2790, %v2789
    %v2857 = vpack.c.b16 %v2792, %v2791
    %v2858 = vpack.c.b16 %v2794, %v2793
    %2923 = vmatprep.subr.bf16.mxu0 0
    %2924 = vmatpush1.bf16.msra.mxu0 %v2795
    %2925 = vmatprep.subr.bf16.mxu0 0
    %2926 = vmatpush1.bf16.msra.mxu0 %v2796
    %2927 = vmatprep.subr.bf16.mxu0 0
    %2928 = vmatpush1.bf16.msra.mxu0 %v2797
    %2929 = vmatprep.subr.bf16.mxu0 0
    %2930 = vmatpush1.bf16.msra.mxu0 %v2798
    %2931 = vmatprep.subr.bf16.mxu0 0
    %2932 = vmatpush1.bf16.msra.mxu0 %v2799
    %2933 = vmatprep.subr.bf16.mxu0 0
    %2934 = vmatpush1.bf16.msra.mxu0 %v2800
    %2935 = vmatprep.subr.bf16.mxu0 0
    %2936 = vmatpush1.bf16.msra.mxu0 %v2801
    %2937 = vmatprep.subr.bf16.mxu0 0
    %2938 = vmatpush1.bf16.msra.mxu0 %v2802
    %2939 = vmatprep.subr.bf16.mxu0 0
    %2940 = vmatpush1.bf16.msra.mxu0 %v2803
    %2941 = vmatprep.subr.bf16.mxu0 0
    %2942 = vmatpush1.bf16.msra.mxu0 %v2804
    %2943 = vmatprep.subr.bf16.mxu0 0
    %2944 = vmatpush1.bf16.msra.mxu0 %v2805
    %2945 = vmatprep.subr.bf16.mxu0 0
    %2946 = vmatpush1.bf16.msra.mxu0 %v2806
    %2947 = vmatprep.subr.bf16.mxu0 0
    %2948 = vmatpush1.bf16.msra.mxu0 %v2807
    %2949 = vmatprep.subr.bf16.mxu0 0
    %2950 = vmatpush1.bf16.msra.mxu0 %v2808
    %2951 = vmatprep.subr.bf16.mxu0 0
    %2952 = vmatpush1.bf16.msra.mxu0 %v2809
    %2953 = vmatprep.subr.bf16.mxu0 0
    %2954 = vmatpush1.bf16.msra.mxu0 %v2810
    %2955 = vmatprep.mubr.bf16.mxu0 %v2397
    %2956 = vmatmul.mubr.bf16.gmra.mrb[0].mxu0 %v2396
    %v2957 = vpop.f32.mrb[0].mxu0
    %v2958 = vadd.f32 %v2537, %v2957
    %v2959 = vpop.f32.mrb[0].mxu0
    %v2960 = vpop.f32.mrb[0].mxu0
    %v2961 = vpop.f32.mrb[0].mxu0
    %2962 = vdwg.mxu0
    %2963 = vmatprep.subr.bf16.mxu0 0
    %2964 = vmatpush1.bf16.msra.mxu0 %v2811
    %2965 = vmatprep.subr.bf16.mxu0 0
    %2966 = vmatpush1.bf16.msra.mxu0 %v2812
    %2967 = vmatprep.subr.bf16.mxu0 0
    %2968 = vmatpush1.bf16.msra.mxu0 %v2813
    %2969 = vmatprep.subr.bf16.mxu0 0
    %2970 = vmatpush1.bf16.msra.mxu0 %v2814
    %2971 = vmatprep.subr.bf16.mxu0 0
    %2972 = vmatpush1.bf16.msra.mxu0 %v2815
    %2973 = vmatprep.subr.bf16.mxu0 0
    %2974 = vmatpush1.bf16.msra.mxu0 %v2816
    %2975 = vmatprep.subr.bf16.mxu0 0
    %2976 = vmatpush1.bf16.msra.mxu0 %v2817
    %2977 = vmatprep.subr.bf16.mxu0 0
    %2978 = vmatpush1.bf16.msra.mxu0 %v2818
    %2979 = vmatprep.subr.bf16.mxu0 0
    %2980 = vmatpush1.bf16.msra.mxu0 %v2819
    %2981 = vmatprep.subr.bf16.mxu0 0
    %2982 = vmatpush1.bf16.msra.mxu0 %v2820
    %2983 = vmatprep.subr.bf16.mxu0 0
    %2984 = vmatpush1.bf16.msra.mxu0 %v2821
    %2985 = vmatprep.subr.bf16.mxu0 0
    %2986 = vmatpush1.bf16.msra.mxu0 %v2822
    %2987 = vmatprep.subr.bf16.mxu0 0
    %2988 = vmatpush1.bf16.msra.mxu0 %v2823
    %2989 = vmatprep.subr.bf16.mxu0 0
    %2990 = vmatpush1.bf16.msra.mxu0 %v2824
    %2991 = vmatprep.subr.bf16.mxu0 0
    %2992 = vmatpush1.bf16.msra.mxu0 %v2825
    %2993 = vmatprep.subr.bf16.mxu0 0
    %2994 = vmatpush1.bf16.msra.mxu0 %v2826
    %2995 = vmatprep.mubr.bf16.mxu0 %v2399
    %2996 = vmatmul.mubr.bf16.gmra.mrb[0].mxu0 %v2398
    %v2997 = vpop.f32.mrb[0].mxu0
    %v2998 = vadd.f32 %v2958, %v2997
    %v2999 = vpop.f32.mrb[0].mxu0
    %v3000 = vpop.f32.mrb[0].mxu0
    %v3001 = vpop.f32.mrb[0].mxu0
    %3002 = vdwg.mxu0
    %3003 = vmatprep.subr.bf16.mxu0 0
    %3004 = vmatpush1.bf16.msra.mxu0 %v2827
    %3005 = vmatprep.subr.bf16.mxu0 0
    %3006 = vmatpush1.bf16.msra.mxu0 %v2828
    %3007 = vmatprep.subr.bf16.mxu0 0
    %3008 = vmatpush1.bf16.msra.mxu0 %v2829
    %3009 = vmatprep.subr.bf16.mxu0 0
    %3010 = vmatpush1.bf16.msra.mxu0 %v2830
    %3011 = vmatprep.subr.bf16.mxu0 0
    %3012 = vmatpush1.bf16.msra.mxu0 %v2831
    %3013 = vmatprep.subr.bf16.mxu0 0
    %3014 = vmatpush1.bf16.msra.mxu0 %v2832
    %3015 = vmatprep.subr.bf16.mxu0 0
    %3016 = vmatpush1.bf16.msra.mxu0 %v2833
    %3017 = vmatprep.subr.bf16.mxu0 0
    %3018 = vmatpush1.bf16.msra.mxu0 %v2834
    %3019 = vmatprep.subr.bf16.mxu0 0
    %3020 = vmatpush1.bf16.msra.mxu0 %v2835
    %3021 = vmatprep.subr.bf16.mxu0 0
    %3022 = vmatpush1.bf16.msra.mxu0 %v2836
    %3023 = vmatprep.subr.bf16.mxu0 0
    %3024 = vmatpush1.bf16.msra.mxu0 %v2837
    %3025 = vmatprep.subr.bf16.mxu0 0
    %3026 = vmatpush1.bf16.msra.mxu0 %v2838
    %3027 = vmatprep.subr.bf16.mxu0 0
    %3028 = vmatpush1.bf16.msra.mxu0 %v2839
    %3029 = vmatprep.subr.bf16.mxu0 0
    %3030 = vmatpush1.bf16.msra.mxu0 %v2840
    %3031 = vmatprep.subr.bf16.mxu0 0
    %3032 = vmatpush1.bf16.msra.mxu0 %v2841
    %3033 = vmatprep.subr.bf16.mxu0 0
    %3034 = vmatpush1.bf16.msra.mxu0 %v2842
    %3035 = vmatprep.mubr.bf16.mxu0 %v2401
    %3036 = vmatmul.mubr.bf16.gmra.mrb[0].mxu0 %v2400
    %v3037 = vpop.f32.mrb[0].mxu0
    %v3038 = vadd.f32 %v2998, %v3037
    %v3039 = vpop.f32.mrb[0].mxu0
    %v3040 = vpop.f32.mrb[0].mxu0
    %v3041 = vpop.f32.mrb[0].mxu0
    %3042 = vdwg.mxu0
    %3043 = vmatprep.subr.bf16.mxu0 0
    %3044 = vmatpush1.bf16.msra.mxu0 %v2843
    %3045 = vmatprep.subr.bf16.mxu0 0
    %3046 = vmatpush1.bf16.msra.mxu0 %v2844
    %3047 = vmatprep.subr.bf16.mxu0 0
    %3048 = vmatpush1.bf16.msra.mxu0 %v2845
    %3049 = vmatprep.subr.bf16.mxu0 0
    %3050 = vmatpush1.bf16.msra.mxu0 %v2846
    %3051 = vmatprep.subr.bf16.mxu0 0
    %3052 = vmatpush1.bf16.msra.mxu0 %v2847
    %3053 = vmatprep.subr.bf16.mxu0 0
    %3054 = vmatpush1.bf16.msra.mxu0 %v2848
    %3055 = vmatprep.subr.bf16.mxu0 0
    %3056 = vmatpush1.bf16.msra.mxu0 %v2849
    %3057 = vmatprep.subr.bf16.mxu0 0
    %3058 = vmatpush1.bf16.msra.mxu0 %v2850
    %3059 = vmatprep.subr.bf16.mxu0 0
    %3060 = vmatpush1.bf16.msra.mxu0 %v2851
    %3061 = vmatprep.subr.bf16.mxu0 0
    %3062 = vmatpush1.bf16.msra.mxu0 %v2852
    %3063 = vmatprep.subr.bf16.mxu0 0
    %3064 = vmatpush1.bf16.msra.mxu0 %v2853
    %3065 = vmatprep.subr.bf16.mxu0 0
    %3066 = vmatpush1.bf16.msra.mxu0 %v2854
    %3067 = vmatprep.subr.bf16.mxu0 0
    %3068 = vmatpush1.bf16.msra.mxu0 %v2855
    %3069 = vmatprep.subr.bf16.mxu0 0
    %3070 = vmatpush1.bf16.msra.mxu0 %v2856
    %3071 = vmatprep.subr.bf16.mxu0 0
    %3072 = vmatpush1.bf16.msra.mxu0 %v2857
    %3073 = vmatprep.subr.bf16.mxu0 0
    %3074 = vmatpush1.bf16.msra.mxu0 %v2858
    %3075 = vmatprep.mubr.bf16.mxu0 %v2403
    %3076 = vmatmul.mubr.bf16.gmra.mrb[0].mxu0 %v2402
    %v3077 = vpop.f32.mrb[0].mxu0
    %v3078 = vadd.f32 %v3038, %v3077
    %v3079 = vpop.f32.mrb[0].mxu0
    %v3080 = vpop.f32.mrb[0].mxu0
    %v3081 = vpop.f32.mrb[0].mxu0
    %3082 = vdwg.mxu0
    %3083 = vst [vmem:[#allocation8] sm:$0x3] %v3078
    // Predicated region
    $region42: #{dueling_dqn_forward.1} parent=1 // pred_check
      _
    $region43: #{dueling_dqn_forward.1} parent=1 // pred_check_branch
      %3085 = sbr.rel (0) target = $region45
    $region44: #{dueling_dqn_forward.1} parent=1 // pred_region
      %s3087 = ssub.s32 32, 32
      %3088 = vsyncadd [#allocation4], %s3087
      %s3090 = sshll.u32 [#allocation8], 4
      %s3091 = int_to_ptr.vmem [resolvable:$true] %s3090
      %3093 = dma.vmem_to_hbm [thread:$0]  %s3091, 32, %s7, [#allocation4]
    $region45: #{dueling_dqn_forward.1} parent=1 // pred_fallthru
      _
    // Predicated region
    $region46: #{dueling_dqn_forward.1} parent=1 // pred_check
      _
    $region47: #{dueling_dqn_forward.1} parent=1 // pred_check_branch
      %3095 = sbr.rel (0) target = $region49
    $region48: #{dueling_dqn_forward.1} parent=1 // pred_region
      %3096 = dma.done [#allocation4], 32
    $region49: #{dueling_dqn_forward.1} parent=1 // pred_fallthru
      _
    %3097 = vsyncpa [#allocation3], 1
    %3098 = vsyncpa [#allocation6], 1
    %3099 = vsyncpa [#allocation4], 1

</llo_original>
